<compile_context>
chip_gen: v5e
topology: v5e:2x2
jax: 0.10.0
libtpu: 0.0.40
codegen_flags: <defaults>
</compile_context>

<pallas_src>
import functools

import jax
import jax.numpy as jnp
from jax.experimental import pallas as pl
from jax.experimental.pallas import tpu as pltpu

DILATIONS = (1, 2, 4, 8)
MAXD = 8            # max dilation -> zero-pad rows on each side for shifted reads
BN_EPS = 1e-5
LRELU_SLOPE = 0.2
LANE = 128
SUBLANE = 8


# ----------------------------------- fused GBlock kernel --------------------

def _gblock_kernel(x_ref, keep_ref,
                   s0_ref, t0_ref, s1_ref, t1_ref, s2_ref, t2_ref, s3_ref, t3_ref,
                   w0_ref, b0_ref, w1_ref, b1_ref, w2_ref, b2_ref, w3_ref, b3_ref,
                   sw_ref, sb_ref, o_ref, *, seq_len):
    """One grid step = one batch item, full (padded) length, padded channels."""
    Lp = x_ref.shape[1]

    x = x_ref[0]              # (Lp, Cin_p)  f32
    keep = keep_ref[0]        # (Lp, 1)      f32   (user mask; 1 where kept)

    # Rows >= seq_len are artificial length padding: they must look like the
    # implicit zero padding of each Conv1d, so conv *inputs* are zeroed there.
    if seq_len == Lp:
        valid = None
    else:
        valid = (jax.lax.broadcasted_iota(jnp.int32, (Lp, 1), 0)
                 < seq_len).astype(jnp.float32)

    def cbn_lrelu(h, s_ref, t_ref):
        # conditional BN folded to per-(n, c) affine, then LeakyReLU(0.2).
        h = h * s_ref[0] + t_ref[0]
        return jnp.where(h > 0, h, LRELU_SLOPE * h)

    def conv_k3(h, w_ref, b_ref, d):
        # h: (Lp, C) f32.  Fused 3-tap dilated conv:
        #   gather taps (l-d, l, l+d) via static slices of a zero-padded copy,
        #   concat along channels -> (Lp, 3C), single bf16 MXU matmul.
        C = h.shape[-1]
        hz = h if valid is None else h * valid
        zpad = jnp.zeros((MAXD, C), jnp.float32)
        hp = jnp.concatenate([zpad, hz, zpad], axis=0)          # (Lp + 16, C)
        taps = [hp[MAXD + (k - 1) * d: MAXD + (k - 1) * d + Lp, :]
                for k in range(3)]
        h3 = jnp.concatenate(taps, axis=1).astype(jnp.bfloat16)  # (Lp, 3C)
        out = jnp.dot(h3, w_ref[...], preferred_element_type=jnp.float32)
        return out + b_ref[...]

    identity = x

    # block 0: cond_bn -> lrelu -> (dropout = id) -> conv(d=1) -> mask
    h = conv_k3(cbn_lrelu(x, s0_ref, t0_ref), w0_ref, b0_ref, DILATIONS[0]) * keep
    # block 1: cond_bn -> lrelu -> conv(d=2) -> mask
    h = conv_k3(cbn_lrelu(h, s1_ref, t1_ref), w1_ref, b1_ref, DILATIONS[1]) * keep

    # shortcut (1x1 conv on the original input) + residual + mask
    sc = jnp.dot(identity.astype(jnp.bfloat16), sw_ref[...],
                 preferred_element_type=jnp.float32) + sb_ref[...]
    h = (h + sc) * keep

    identity2 = h

    # block 2: cond_bn -> lrelu -> conv(d=4) -> mask
    h = conv_k3(cbn_lrelu(h, s2_ref, t2_ref), w2_ref, b2_ref, DILATIONS[2]) * keep
    # block 3: cond_bn -> lrelu -> conv(d=8) -> mask
    h = conv_k3(cbn_lrelu(h, s3_ref, t3_ref), w3_ref, b3_ref, DILATIONS[3]) * keep

    o_ref[0] = h + identity2


# ----------------------------------- helpers ---------------------------------

def _round_up(v, m):
    return ((v + m - 1) // m) * m


def _pad_to(a, axis, target):
    pad = target - a.shape[axis]
    if pad <= 0:
        return a
    widths = [(0, 0)] * a.ndim
    widths[axis] = (0, pad)
    return jnp.pad(a, widths)


def init_gblock_params(key, in_channels, out_channels, condition_dim):
    """Deterministic synthetic parameters (kernel-friendly layouts)."""
    chans = [in_channels] + [out_channels] * 3
    params = {"bn_mean": [], "bn_var": [], "proj_w": [], "proj_b": [],
              "conv_w": [], "conv_b": []}
    keys = jax.random.split(key, 4 * 4 + 2)
    for i in range(4):
        C = chans[i]
        k0, k1, k2, k3 = keys[4 * i: 4 * i + 4]
        params["bn_mean"].append(0.1 * jax.random.normal(k0, (C,), jnp.float32))
        params["bn_var"].append(
            1.0 + 0.1 * jax.random.uniform(k1, (C,), jnp.float32))
        params["proj_w"].append(
            0.1 * jax.random.normal(k2, (condition_dim, 2 * C), jnp.float32))
        # bias initialised so gamma ~ 1, beta ~ 0
        params["proj_b"].append(
            jnp.concatenate([jnp.ones((C,), jnp.float32),
                             jnp.zeros((C,), jnp.float32)]))
        # (3, Cin_i, Cout): tap-major, channels-last weights
        params["conv_w"].append(
            0.1 * jax.random.normal(k3, (3, C, out_channels), jnp.float32))
        params["conv_b"].append(jnp.zeros((out_channels,), jnp.float32))
    params["sc_w"] = 0.1 * jax.random.normal(
        keys[-2], (in_channels, out_channels), jnp.float32)
    params["sc_b"] = jnp.zeros((out_channels,), jnp.float32)
    return params


# ----------------------------------- wrapper ---------------------------------

def gblock_forward(x_ncl, z, params, mask=None):
    """x_ncl: (N, Cin, L) f32 (PyTorch NCL). z: (N, condition_dim).
    mask (optional): bool (N, 1, L), True = positions to zero out.
    Returns (N, Cout, L) f32."""
    N, Cin, L = x_ncl.shape
    Cout = params["conv_w"][0].shape[-1]
    Cin_p = _round_up(Cin, LANE)
    Cout_p = _round_up(Cout, LANE)
    Lp = _round_up(L, SUBLANE)

    # activations: NCL -> NLC, zero-pad L and channels
    x = jnp.transpose(x_ncl.astype(jnp.float32), (0, 2, 1))     # (N, L, Cin)
    x = _pad_to(_pad_to(x, 2, Cin_p), 1, Lp)                    # (N, Lp, Cin_p)

    if mask is None:
        keep = jnp.ones((N, Lp, 1), jnp.float32)
    else:
        keep = 1.0 - jnp.transpose(mask.astype(jnp.float32), (0, 2, 1))
        keep = jnp.pad(keep, ((0, 0), (0, Lp - L), (0, 0)), constant_values=1.0)

    # hoisted conditional-BN: fold running stats + Linear(z) into (scale, shift)
    z32 = z.astype(jnp.float32)
    scales, shifts = [], []
    for i in range(4):
        Ci = params["bn_mean"][i].shape[0]
        Cp = Cin_p if i == 0 else Cout_p
        gb = z32 @ params["proj_w"][i] + params["proj_b"][i]     # (N, 2Ci)
        gamma, beta = gb[:, :Ci], gb[:, Ci:]
        inv = jax.lax.rsqrt(params["bn_var"][i] + BN_EPS)
        sc = gamma * inv
        sh = beta - gamma * params["bn_mean"][i] * inv
        scales.append(_pad_to(sc, 1, Cp)[:, None, :])            # (N, 1, Cp)
        shifts.append(_pad_to(sh, 1, Cp)[:, None, :])

    # conv weights: (3, Ci, Cout) -> padded -> (3*Ci_p, Cout_p) bf16
    conv_ws, conv_bs = [], []
    for i in range(4):
        Cp_in = Cin_p if i == 0 else Cout_p
        w = _pad_to(_pad_to(params["conv_w"][i], 1, Cp_in), 2, Cout_p)
        conv_ws.append(w.reshape(3 * Cp_in, Cout_p).astype(jnp.bfloat16))
        conv_bs.append(_pad_to(params["conv_b"][i][None, :], 1, Cout_p))
    sw = _pad_to(_pad_to(params["sc_w"], 0, Cin_p), 1, Cout_p).astype(jnp.bfloat16)
    sb = _pad_to(params["sc_b"][None, :], 1, Cout_p)

    flat_args = [x, keep]
    for i in range(4):
        flat_args += [scales[i], shifts[i]]
    for i in range(4):
        flat_args += [conv_ws[i], conv_bs[i]]
    flat_args += [sw, sb]

    in_specs = [
        pl.BlockSpec((1, Lp, Cin_p), lambda n: (n, 0, 0)),       # x
        pl.BlockSpec((1, Lp, 1), lambda n: (n, 0, 0)),           # keep
    ]
    for i in range(4):
        Cp = Cin_p if i == 0 else Cout_p
        in_specs += [pl.BlockSpec((1, 1, Cp), lambda n: (n, 0, 0)),
                     pl.BlockSpec((1, 1, Cp), lambda n: (n, 0, 0))]
    for i in range(4):
        Cp_in = Cin_p if i == 0 else Cout_p
        in_specs += [pl.BlockSpec((3 * Cp_in, Cout_p), lambda n: (0, 0)),
                     pl.BlockSpec((1, Cout_p), lambda n: (0, 0))]
    in_specs += [pl.BlockSpec((Cin_p, Cout_p), lambda n: (0, 0)),
                 pl.BlockSpec((1, Cout_p), lambda n: (0, 0))]

    out = pl.pallas_call(
        functools.partial(_gblock_kernel, seq_len=L),
        out_shape=jax.ShapeDtypeStruct((N, Lp, Cout_p), jnp.float32),
        grid=(N,),
        in_specs=in_specs,
        out_specs=pl.BlockSpec((1, Lp, Cout_p), lambda n: (n, 0, 0)),
        compiler_params=pltpu.CompilerParams(
            dimension_semantics=("parallel",)),
    )(*flat_args)

    return jnp.transpose(out[:, :L, :Cout], (0, 2, 1))           # (N, Cout, L)


if __name__ == "__main__":
    N, Cin, Cout, Cd, L = 2, 4, 8, 16, 16
    key = jax.random.PRNGKey(0)
    kx, kz, kp = jax.random.split(key, 3)

    x = jax.random.normal(kx, (N, Cin, L), jnp.float32)          # PyTorch NCL
    z = jax.random.normal(kz, (N, Cd), jnp.float32)
    params = init_gblock_params(kp, Cin, Cout, Cd)

    y = gblock_forward(x, z, params, mask=None)
    jax.block_until_ready(y)
    assert y.shape == (N, Cout, L)
    assert bool(jnp.all(jnp.isfinite(y)))
    print("KERNEL_OK")
</pallas_src>

<mosaic_0001>
module attributes {stable_mosaic.version = 11 : i64} {
  func.func @_gblock_kernel(%arg0: i32, %arg1: memref<1x16x128xf32, #tpu.memory_space<vmem>>, %arg2: memref<1x16x1xf32, #tpu.memory_space<vmem>>, %arg3: memref<1x1x128xf32, #tpu.memory_space<vmem>>, %arg4: memref<1x1x128xf32, #tpu.memory_space<vmem>>, %arg5: memref<1x1x128xf32, #tpu.memory_space<vmem>>, %arg6: memref<1x1x128xf32, #tpu.memory_space<vmem>>, %arg7: memref<1x1x128xf32, #tpu.memory_space<vmem>>, %arg8: memref<1x1x128xf32, #tpu.memory_space<vmem>>, %arg9: memref<1x1x128xf32, #tpu.memory_space<vmem>>, %arg10: memref<1x1x128xf32, #tpu.memory_space<vmem>>, %arg11: memref<384x128xbf16, #tpu.memory_space<vmem>>, %arg12: memref<1x128xf32, #tpu.memory_space<vmem>>, %arg13: memref<384x128xbf16, #tpu.memory_space<vmem>>, %arg14: memref<1x128xf32, #tpu.memory_space<vmem>>, %arg15: memref<384x128xbf16, #tpu.memory_space<vmem>>, %arg16: memref<1x128xf32, #tpu.memory_space<vmem>>, %arg17: memref<384x128xbf16, #tpu.memory_space<vmem>>, %arg18: memref<1x128xf32, #tpu.memory_space<vmem>>, %arg19: memref<128x128xbf16, #tpu.memory_space<vmem>>, %arg20: memref<1x128xf32, #tpu.memory_space<vmem>>, %arg21: memref<1x16x128xf32, #tpu.memory_space<vmem>>) attributes {dimension_semantics = [#tpu.dimension_semantics<parallel>], iteration_bounds = array<i64: 2>, scalar_prefetch = 0 : i64, scratch_operands = 0 : i64, tpu.core_type = #tpu.core_type<tc>, window_params = [{transform_indices = @transform_0, window_bounds = array<i64: 1, 16, 128>}, {transform_indices = @transform_1, window_bounds = array<i64: 1, 16, 1>}, {transform_indices = @transform_2, window_bounds = array<i64: 1, 1, 128>}, {transform_indices = @transform_3, window_bounds = array<i64: 1, 1, 128>}, {transform_indices = @transform_4, window_bounds = array<i64: 1, 1, 128>}, {transform_indices = @transform_5, window_bounds = array<i64: 1, 1, 128>}, {transform_indices = @transform_6, window_bounds = array<i64: 1, 1, 128>}, {transform_indices = @transform_7, window_bounds = array<i64: 1, 1, 128>}, {transform_indices = @transform_8, window_bounds = array<i64: 1, 1, 128>}, {transform_indices = @transform_9, window_bounds = array<i64: 1, 1, 128>}, {pipeline_mode = #tpu.pipeline_mode<synchronous>, transform_indices = @transform_10, window_bounds = array<i64: 384, 128>}, {pipeline_mode = #tpu.pipeline_mode<synchronous>, transform_indices = @transform_11, window_bounds = array<i64: 1, 128>}, {pipeline_mode = #tpu.pipeline_mode<synchronous>, transform_indices = @transform_12, window_bounds = array<i64: 384, 128>}, {pipeline_mode = #tpu.pipeline_mode<synchronous>, transform_indices = @transform_13, window_bounds = array<i64: 1, 128>}, {pipeline_mode = #tpu.pipeline_mode<synchronous>, transform_indices = @transform_14, window_bounds = array<i64: 384, 128>}, {pipeline_mode = #tpu.pipeline_mode<synchronous>, transform_indices = @transform_15, window_bounds = array<i64: 1, 128>}, {pipeline_mode = #tpu.pipeline_mode<synchronous>, transform_indices = @transform_16, window_bounds = array<i64: 384, 128>}, {pipeline_mode = #tpu.pipeline_mode<synchronous>, transform_indices = @transform_17, window_bounds = array<i64: 1, 128>}, {pipeline_mode = #tpu.pipeline_mode<synchronous>, transform_indices = @transform_18, window_bounds = array<i64: 128, 128>}, {pipeline_mode = #tpu.pipeline_mode<synchronous>, transform_indices = @transform_19, window_bounds = array<i64: 1, 128>}, {transform_indices = @transform_20, window_bounds = array<i64: 1, 16, 128>}]} {
    %c0 = arith.constant 0 : index
    %c0_0 = arith.constant 0 : index
    %c0_1 = arith.constant 0 : index
    %0 = vector.load %arg1[%c0, %c0_0, %c0_1] : memref<1x16x128xf32, #tpu.memory_space<vmem>>, vector<1x16x128xf32>
    %1 = vector.shape_cast %0 : vector<1x16x128xf32> to vector<16x128xf32>
    %c0_2 = arith.constant 0 : index
    %c0_3 = arith.constant 0 : index
    %c0_4 = arith.constant 0 : index
    %2 = vector.load %arg2[%c0_2, %c0_3, %c0_4] : memref<1x16x1xf32, #tpu.memory_space<vmem>>, vector<1x16x1xf32>
    %3 = vector.shape_cast %2 : vector<1x16x1xf32> to vector<16x1xf32>
    %c0_5 = arith.constant 0 : index
    %c0_6 = arith.constant 0 : index
    %c0_7 = arith.constant 0 : index
    %4 = vector.load %arg3[%c0_5, %c0_6, %c0_7] : memref<1x1x128xf32, #tpu.memory_space<vmem>>, vector<1x1x128xf32>
    %5 = vector.shape_cast %4 : vector<1x1x128xf32> to vector<1x128xf32>
    %6 = vector.broadcast %5 : vector<1x128xf32> to vector<16x128xf32>
    %7 = arith.mulf %1, %6 : vector<16x128xf32>
    %c0_8 = arith.constant 0 : index
    %c0_9 = arith.constant 0 : index
    %c0_10 = arith.constant 0 : index
    %8 = vector.load %arg4[%c0_8, %c0_9, %c0_10] : memref<1x1x128xf32, #tpu.memory_space<vmem>>, vector<1x1x128xf32>
    %9 = vector.shape_cast %8 : vector<1x1x128xf32> to vector<1x128xf32>
    %10 = vector.broadcast %9 : vector<1x128xf32> to vector<16x128xf32>
    %11 = arith.addf %7, %10 : vector<16x128xf32>
    %cst = arith.constant 0.000000e+00 : f32
    %12 = vector.broadcast %cst : f32 to vector<16x128xf32>
    %13 = arith.cmpf ogt, %11, %12 : vector<16x128xf32>
    %cst_11 = arith.constant 2.000000e-01 : f32
    %14 = vector.broadcast %cst_11 : f32 to vector<16x128xf32>
    %15 = arith.mulf %14, %11 : vector<16x128xf32>
    %16 = arith.select %13, %11, %15 : vector<16x128xi1>, vector<16x128xf32>
    %cst_12 = arith.constant 0.000000e+00 : f32
    %17 = vector.broadcast %cst_12 : f32 to vector<8x128xf32>
    %18 = tpu.concatenate %17, %16, %17 in 0 : vector<8x128xf32>, vector<16x128xf32>, vector<8x128xf32> -> vector<32x128xf32>
    %19 = vector.extract_strided_slice %18 {offsets = [7, 0], sizes = [16, 128], strides = [1, 1]} : vector<32x128xf32> to vector<16x128xf32>
    %20 = vector.extract_strided_slice %18 {offsets = [8, 0], sizes = [16, 128], strides = [1, 1]} : vector<32x128xf32> to vector<16x128xf32>
    %21 = vector.extract_strided_slice %18 {offsets = [9, 0], sizes = [16, 128], strides = [1, 1]} : vector<32x128xf32> to vector<16x128xf32>
    %22 = tpu.concatenate %19, %20, %21 in 1 : vector<16x128xf32>, vector<16x128xf32>, vector<16x128xf32> -> vector<16x384xf32>
    %23 = arith.truncf %22 : vector<16x384xf32> to vector<16x384xbf16>
    %c0_13 = arith.constant 0 : index
    %c0_14 = arith.constant 0 : index
    %24 = vector.load %arg11[%c0_13, %c0_14] : memref<384x128xbf16, #tpu.memory_space<vmem>>, vector<384x128xbf16>
    %cst_15 = arith.constant dense<0.000000e+00> : vector<16x128xf32>
    %25 = tpu.matmul %23, %24, %cst_15 {dimension_numbers = #tpu.dot_dimension_numbers<[1], [0], [0], [1], [0, 0, 1, 1], [], []>} : vector<16x384xbf16>, vector<384x128xbf16>, vector<16x128xf32> -> vector<16x128xf32>
    %c0_16 = arith.constant 0 : index
    %c0_17 = arith.constant 0 : index
    %26 = vector.load %arg12[%c0_16, %c0_17] : memref<1x128xf32, #tpu.memory_space<vmem>>, vector<1x128xf32>
    %27 = vector.broadcast %26 : vector<1x128xf32> to vector<16x128xf32>
    %28 = arith.addf %25, %27 : vector<16x128xf32>
    %29 = vector.broadcast %3 : vector<16x1xf32> to vector<16x128xf32>
    %30 = arith.mulf %28, %29 : vector<16x128xf32>
    %c0_18 = arith.constant 0 : index
    %c0_19 = arith.constant 0 : index
    %c0_20 = arith.constant 0 : index
    %31 = vector.load %arg5[%c0_18, %c0_19, %c0_20] : memref<1x1x128xf32, #tpu.memory_space<vmem>>, vector<1x1x128xf32>
    %32 = vector.shape_cast %31 : vector<1x1x128xf32> to vector<1x128xf32>
    %33 = vector.broadcast %32 : vector<1x128xf32> to vector<16x128xf32>
    %34 = arith.mulf %30, %33 : vector<16x128xf32>
    %c0_21 = arith.constant 0 : index
    %c0_22 = arith.constant 0 : index
    %c0_23 = arith.constant 0 : index
    %35 = vector.load %arg6[%c0_21, %c0_22, %c0_23] : memref<1x1x128xf32, #tpu.memory_space<vmem>>, vector<1x1x128xf32>
    %36 = vector.shape_cast %35 : vector<1x1x128xf32> to vector<1x128xf32>
    %37 = vector.broadcast %36 : vector<1x128xf32> to vector<16x128xf32>
    %38 = arith.addf %34, %37 : vector<16x128xf32>
    %cst_24 = arith.constant 0.000000e+00 : f32
    %39 = vector.broadcast %cst_24 : f32 to vector<16x128xf32>
    %40 = arith.cmpf ogt, %38, %39 : vector<16x128xf32>
    %cst_25 = arith.constant 2.000000e-01 : f32
    %41 = vector.broadcast %cst_25 : f32 to vector<16x128xf32>
    %42 = arith.mulf %41, %38 : vector<16x128xf32>
    %43 = arith.select %40, %38, %42 : vector<16x128xi1>, vector<16x128xf32>
    %cst_26 = arith.constant 0.000000e+00 : f32
    %44 = vector.broadcast %cst_26 : f32 to vector<8x128xf32>
    %45 = tpu.concatenate %44, %43, %44 in 0 : vector<8x128xf32>, vector<16x128xf32>, vector<8x128xf32> -> vector<32x128xf32>
    %46 = vector.extract_strided_slice %45 {offsets = [6, 0], sizes = [16, 128], strides = [1, 1]} : vector<32x128xf32> to vector<16x128xf32>
    %47 = vector.extract_strided_slice %45 {offsets = [8, 0], sizes = [16, 128], strides = [1, 1]} : vector<32x128xf32> to vector<16x128xf32>
    %48 = vector.extract_strided_slice %45 {offsets = [10, 0], sizes = [16, 128], strides = [1, 1]} : vector<32x128xf32> to vector<16x128xf32>
    %49 = tpu.concatenate %46, %47, %48 in 1 : vector<16x128xf32>, vector<16x128xf32>, vector<16x128xf32> -> vector<16x384xf32>
    %50 = arith.truncf %49 : vector<16x384xf32> to vector<16x384xbf16>
    %c0_27 = arith.constant 0 : index
    %c0_28 = arith.constant 0 : index
    %51 = vector.load %arg13[%c0_27, %c0_28] : memref<384x128xbf16, #tpu.memory_space<vmem>>, vector<384x128xbf16>
    %cst_29 = arith.constant dense<0.000000e+00> : vector<16x128xf32>
    %52 = tpu.matmul %50, %51, %cst_29 {dimension_numbers = #tpu.dot_dimension_numbers<[1], [0], [0], [1], [0, 0, 1, 1], [], []>} : vector<16x384xbf16>, vector<384x128xbf16>, vector<16x128xf32> -> vector<16x128xf32>
    %c0_30 = arith.constant 0 : index
    %c0_31 = arith.constant 0 : index
    %53 = vector.load %arg14[%c0_30, %c0_31] : memref<1x128xf32, #tpu.memory_space<vmem>>, vector<1x128xf32>
    %54 = vector.broadcast %53 : vector<1x128xf32> to vector<16x128xf32>
    %55 = arith.addf %52, %54 : vector<16x128xf32>
    %56 = vector.broadcast %3 : vector<16x1xf32> to vector<16x128xf32>
    %57 = arith.mulf %55, %56 : vector<16x128xf32>
    %58 = arith.truncf %1 : vector<16x128xf32> to vector<16x128xbf16>
    %c0_32 = arith.constant 0 : index
    %c0_33 = arith.constant 0 : index
    %59 = vector.load %arg19[%c0_32, %c0_33] : memref<128x128xbf16, #tpu.memory_space<vmem>>, vector<128x128xbf16>
    %cst_34 = arith.constant dense<0.000000e+00> : vector<16x128xf32>
    %60 = tpu.matmul %58, %59, %cst_34 {dimension_numbers = #tpu.dot_dimension_numbers<[1], [0], [0], [1], [0, 0, 1, 1], [], []>} : vector<16x128xbf16>, vector<128x128xbf16>, vector<16x128xf32> -> vector<16x128xf32>
    %c0_35 = arith.constant 0 : index
    %c0_36 = arith.constant 0 : index
    %61 = vector.load %arg20[%c0_35, %c0_36] : memref<1x128xf32, #tpu.memory_space<vmem>>, vector<1x128xf32>
    %62 = vector.broadcast %61 : vector<1x128xf32> to vector<16x128xf32>
    %63 = arith.addf %60, %62 : vector<16x128xf32>
    %64 = arith.addf %57, %63 : vector<16x128xf32>
    %65 = vector.broadcast %3 : vector<16x1xf32> to vector<16x128xf32>
    %66 = arith.mulf %64, %65 : vector<16x128xf32>
    %c0_37 = arith.constant 0 : index
    %c0_38 = arith.constant 0 : index
    %c0_39 = arith.constant 0 : index
    %67 = vector.load %arg7[%c0_37, %c0_38, %c0_39] : memref<1x1x128xf32, #tpu.memory_space<vmem>>, vector<1x1x128xf32>
    %68 = vector.shape_cast %67 : vector<1x1x128xf32> to vector<1x128xf32>
    %69 = vector.broadcast %68 : vector<1x128xf32> to vector<16x128xf32>
    %70 = arith.mulf %66, %69 : vector<16x128xf32>
    %c0_40 = arith.constant 0 : index
    %c0_41 = arith.constant 0 : index
    %c0_42 = arith.constant 0 : index
    %71 = vector.load %arg8[%c0_40, %c0_41, %c0_42] : memref<1x1x128xf32, #tpu.memory_space<vmem>>, vector<1x1x128xf32>
    %72 = vector.shape_cast %71 : vector<1x1x128xf32> to vector<1x128xf32>
    %73 = vector.broadcast %72 : vector<1x128xf32> to vector<16x128xf32>
    %74 = arith.addf %70, %73 : vector<16x128xf32>
    %cst_43 = arith.constant 0.000000e+00 : f32
    %75 = vector.broadcast %cst_43 : f32 to vector<16x128xf32>
    %76 = arith.cmpf ogt, %74, %75 : vector<16x128xf32>
    %cst_44 = arith.constant 2.000000e-01 : f32
    %77 = vector.broadcast %cst_44 : f32 to vector<16x128xf32>
    %78 = arith.mulf %77, %74 : vector<16x128xf32>
    %79 = arith.select %76, %74, %78 : vector<16x128xi1>, vector<16x128xf32>
    %cst_45 = arith.constant 0.000000e+00 : f32
    %80 = vector.broadcast %cst_45 : f32 to vector<8x128xf32>
    %81 = tpu.concatenate %80, %79, %80 in 0 : vector<8x128xf32>, vector<16x128xf32>, vector<8x128xf32> -> vector<32x128xf32>
    %82 = vector.extract_strided_slice %81 {offsets = [4, 0], sizes = [16, 128], strides = [1, 1]} : vector<32x128xf32> to vector<16x128xf32>
    %83 = vector.extract_strided_slice %81 {offsets = [8, 0], sizes = [16, 128], strides = [1, 1]} : vector<32x128xf32> to vector<16x128xf32>
    %84 = vector.extract_strided_slice %81 {offsets = [12, 0], sizes = [16, 128], strides = [1, 1]} : vector<32x128xf32> to vector<16x128xf32>
    %85 = tpu.concatenate %82, %83, %84 in 1 : vector<16x128xf32>, vector<16x128xf32>, vector<16x128xf32> -> vector<16x384xf32>
    %86 = arith.truncf %85 : vector<16x384xf32> to vector<16x384xbf16>
    %c0_46 = arith.constant 0 : index
    %c0_47 = arith.constant 0 : index
    %87 = vector.load %arg15[%c0_46, %c0_47] : memref<384x128xbf16, #tpu.memory_space<vmem>>, vector<384x128xbf16>
    %cst_48 = arith.constant dense<0.000000e+00> : vector<16x128xf32>
    %88 = tpu.matmul %86, %87, %cst_48 {dimension_numbers = #tpu.dot_dimension_numbers<[1], [0], [0], [1], [0, 0, 1, 1], [], []>} : vector<16x384xbf16>, vector<384x128xbf16>, vector<16x128xf32> -> vector<16x128xf32>
    %c0_49 = arith.constant 0 : index
    %c0_50 = arith.constant 0 : index
    %89 = vector.load %arg16[%c0_49, %c0_50] : memref<1x128xf32, #tpu.memory_space<vmem>>, vector<1x128xf32>
    %90 = vector.broadcast %89 : vector<1x128xf32> to vector<16x128xf32>
    %91 = arith.addf %88, %90 : vector<16x128xf32>
    %92 = vector.broadcast %3 : vector<16x1xf32> to vector<16x128xf32>
    %93 = arith.mulf %91, %92 : vector<16x128xf32>
    %c0_51 = arith.constant 0 : index
    %c0_52 = arith.constant 0 : index
    %c0_53 = arith.constant 0 : index
    %94 = vector.load %arg9[%c0_51, %c0_52, %c0_53] : memref<1x1x128xf32, #tpu.memory_space<vmem>>, vector<1x1x128xf32>
    %95 = vector.shape_cast %94 : vector<1x1x128xf32> to vector<1x128xf32>
    %96 = vector.broadcast %95 : vector<1x128xf32> to vector<16x128xf32>
    %97 = arith.mulf %93, %96 : vector<16x128xf32>
    %c0_54 = arith.constant 0 : index
    %c0_55 = arith.constant 0 : index
    %c0_56 = arith.constant 0 : index
    %98 = vector.load %arg10[%c0_54, %c0_55, %c0_56] : memref<1x1x128xf32, #tpu.memory_space<vmem>>, vector<1x1x128xf32>
    %99 = vector.shape_cast %98 : vector<1x1x128xf32> to vector<1x128xf32>
    %100 = vector.broadcast %99 : vector<1x128xf32> to vector<16x128xf32>
    %101 = arith.addf %97, %100 : vector<16x128xf32>
    %cst_57 = arith.constant 0.000000e+00 : f32
    %102 = vector.broadcast %cst_57 : f32 to vector<16x128xf32>
    %103 = arith.cmpf ogt, %101, %102 : vector<16x128xf32>
    %cst_58 = arith.constant 2.000000e-01 : f32
    %104 = vector.broadcast %cst_58 : f32 to vector<16x128xf32>
    %105 = arith.mulf %104, %101 : vector<16x128xf32>
    %106 = arith.select %103, %101, %105 : vector<16x128xi1>, vector<16x128xf32>
    %cst_59 = arith.constant 0.000000e+00 : f32
    %107 = vector.broadcast %cst_59 : f32 to vector<8x128xf32>
    %108 = tpu.concatenate %107, %106, %107 in 0 : vector<8x128xf32>, vector<16x128xf32>, vector<8x128xf32> -> vector<32x128xf32>
    %109 = vector.extract_strided_slice %108 {offsets = [0, 0], sizes = [16, 128], strides = [1, 1]} : vector<32x128xf32> to vector<16x128xf32>
    %110 = vector.extract_strided_slice %108 {offsets = [8, 0], sizes = [16, 128], strides = [1, 1]} : vector<32x128xf32> to vector<16x128xf32>
    %111 = vector.extract_strided_slice %108 {offsets = [16, 0], sizes = [16, 128], strides = [1, 1]} : vector<32x128xf32> to vector<16x128xf32>
    %112 = tpu.concatenate %109, %110, %111 in 1 : vector<16x128xf32>, vector<16x128xf32>, vector<16x128xf32> -> vector<16x384xf32>
    %113 = arith.truncf %112 : vector<16x384xf32> to vector<16x384xbf16>
    %c0_60 = arith.constant 0 : index
    %c0_61 = arith.constant 0 : index
    %114 = vector.load %arg17[%c0_60, %c0_61] : memref<384x128xbf16, #tpu.memory_space<vmem>>, vector<384x128xbf16>
    %cst_62 = arith.constant dense<0.000000e+00> : vector<16x128xf32>
    %115 = tpu.matmul %113, %114, %cst_62 {dimension_numbers = #tpu.dot_dimension_numbers<[1], [0], [0], [1], [0, 0, 1, 1], [], []>} : vector<16x384xbf16>, vector<384x128xbf16>, vector<16x128xf32> -> vector<16x128xf32>
    %c0_63 = arith.constant 0 : index
    %c0_64 = arith.constant 0 : index
    %116 = vector.load %arg18[%c0_63, %c0_64] : memref<1x128xf32, #tpu.memory_space<vmem>>, vector<1x128xf32>
    %117 = vector.broadcast %116 : vector<1x128xf32> to vector<16x128xf32>
    %118 = arith.addf %115, %117 : vector<16x128xf32>
    %119 = vector.broadcast %3 : vector<16x1xf32> to vector<16x128xf32>
    %120 = arith.mulf %118, %119 : vector<16x128xf32>
    %121 = arith.addf %120, %66 : vector<16x128xf32>
    %c0_65 = arith.constant 0 : index
    %c0_66 = arith.constant 0 : index
    %c0_67 = arith.constant 0 : index
    %122 = vector.load %arg21[%c0_65, %c0_66, %c0_67] : memref<1x16x128xf32, #tpu.memory_space<vmem>>, vector<1x16x128xf32>
    %123 = vector.shape_cast %122 : vector<1x16x128xf32> to vector<16x128xf32>
    %124 = vector.shape_cast %121 : vector<16x128xf32> to vector<1x16x128xf32>
    tpu.vector_store %arg21[%c0_65, %c0_66, %c0_67], %124 {strides = array<i32>} : memref<1x16x128xf32, #tpu.memory_space<vmem>>, vector<1x16x128xf32>,
    return
  }
  func.func @transform_0(%arg0: i32) -> (i32, i32, i32) {
    %c0_i32 = arith.constant 0 : i32
    %c0_i32_0 = arith.constant 0 : i32
    %c0_i32_1 = arith.constant 0 : i32
    return %arg0, %c0_i32, %c0_i32_0 : i32, i32, i32
  }
  func.func @transform_1(%arg0: i32) -> (i32, i32, i32) {
    %c0_i32 = arith.constant 0 : i32
    %c0_i32_0 = arith.constant 0 : i32
    %c0_i32_1 = arith.constant 0 : i32
    return %arg0, %c0_i32, %c0_i32_0 : i32, i32, i32
  }
  func.func @transform_2(%arg0: i32) -> (i32, i32, i32) {
    %c0_i32 = arith.constant 0 : i32
    %c0_i32_0 = arith.constant 0 : i32
    %c0_i32_1 = arith.constant 0 : i32
    return %arg0, %c0_i32, %c0_i32_0 : i32, i32, i32
  }
  func.func @transform_3(%arg0: i32) -> (i32, i32, i32) {
    %c0_i32 = arith.constant 0 : i32
    %c0_i32_0 = arith.constant 0 : i32
    %c0_i32_1 = arith.constant 0 : i32
    return %arg0, %c0_i32, %c0_i32_0 : i32, i32, i32
  }
  func.func @transform_4(%arg0: i32) -> (i32, i32, i32) {
    %c0_i32 = arith.constant 0 : i32
    %c0_i32_0 = arith.constant 0 : i32
    %c0_i32_1 = arith.constant 0 : i32
    return %arg0, %c0_i32, %c0_i32_0 : i32, i32, i32
  }
  func.func @transform_5(%arg0: i32) -> (i32, i32, i32) {
    %c0_i32 = arith.constant 0 : i32
    %c0_i32_0 = arith.constant 0 : i32
    %c0_i32_1 = arith.constant 0 : i32
    return %arg0, %c0_i32, %c0_i32_0 : i32, i32, i32
  }
  func.func @transform_6(%arg0: i32) -> (i32, i32, i32) {
    %c0_i32 = arith.constant 0 : i32
    %c0_i32_0 = arith.constant 0 : i32
    %c0_i32_1 = arith.constant 0 : i32
    return %arg0, %c0_i32, %c0_i32_0 : i32, i32, i32
  }
  func.func @transform_7(%arg0: i32) -> (i32, i32, i32) {
    %c0_i32 = arith.constant 0 : i32
    %c0_i32_0 = arith.constant 0 : i32
    %c0_i32_1 = arith.constant 0 : i32
    return %arg0, %c0_i32, %c0_i32_0 : i32, i32, i32
  }
  func.func @transform_8(%arg0: i32) -> (i32, i32, i32) {
    %c0_i32 = arith.constant 0 : i32
    %c0_i32_0 = arith.constant 0 : i32
    %c0_i32_1 = arith.constant 0 : i32
    return %arg0, %c0_i32, %c0_i32_0 : i32, i32, i32
  }
  func.func @transform_9(%arg0: i32) -> (i32, i32, i32) {
    %c0_i32 = arith.constant 0 : i32
    %c0_i32_0 = arith.constant 0 : i32
    %c0_i32_1 = arith.constant 0 : i32
    return %arg0, %c0_i32, %c0_i32_0 : i32, i32, i32
  }
  func.func @transform_10(%arg0: i32) -> (i32, i32) {
    %c0_i32 = arith.constant 0 : i32
    %c0_i32_0 = arith.constant 0 : i32
    %c0_i32_1 = arith.constant 0 : i32
    return %c0_i32, %c0_i32_0 : i32, i32
  }
  func.func @transform_11(%arg0: i32) -> (i32, i32) {
    %c0_i32 = arith.constant 0 : i32
    %c0_i32_0 = arith.constant 0 : i32
    %c0_i32_1 = arith.constant 0 : i32
    return %c0_i32, %c0_i32_0 : i32, i32
  }
  func.func @transform_12(%arg0: i32) -> (i32, i32) {
    %c0_i32 = arith.constant 0 : i32
    %c0_i32_0 = arith.constant 0 : i32
    %c0_i32_1 = arith.constant 0 : i32
    return %c0_i32, %c0_i32_0 : i32, i32
  }
  func.func @transform_13(%arg0: i32) -> (i32, i32) {
    %c0_i32 = arith.constant 0 : i32
    %c0_i32_0 = arith.constant 0 : i32
    %c0_i32_1 = arith.constant 0 : i32
    return %c0_i32, %c0_i32_0 : i32, i32
  }
  func.func @transform_14(%arg0: i32) -> (i32, i32) {
    %c0_i32 = arith.constant 0 : i32
    %c0_i32_0 = arith.constant 0 : i32
    %c0_i32_1 = arith.constant 0 : i32
    return %c0_i32, %c0_i32_0 : i32, i32
  }
  func.func @transform_15(%arg0: i32) -> (i32, i32) {
    %c0_i32 = arith.constant 0 : i32
    %c0_i32_0 = arith.constant 0 : i32
    %c0_i32_1 = arith.constant 0 : i32
    return %c0_i32, %c0_i32_0 : i32, i32
  }
  func.func @transform_16(%arg0: i32) -> (i32, i32) {
    %c0_i32 = arith.constant 0 : i32
    %c0_i32_0 = arith.constant 0 : i32
    %c0_i32_1 = arith.constant 0 : i32
    return %c0_i32, %c0_i32_0 : i32, i32
  }
  func.func @transform_17(%arg0: i32) -> (i32, i32) {
    %c0_i32 = arith.constant 0 : i32
    %c0_i32_0 = arith.constant 0 : i32
    %c0_i32_1 = arith.constant 0 : i32
    return %c0_i32, %c0_i32_0 : i32, i32
  }
  func.func @transform_18(%arg0: i32) -> (i32, i32) {
    %c0_i32 = arith.constant 0 : i32
    %c0_i32_0 = arith.constant 0 : i32
    %c0_i32_1 = arith.constant 0 : i32
    return %c0_i32, %c0_i32_0 : i32, i32
  }
  func.func @transform_19(%arg0: i32) -> (i32, i32) {
    %c0_i32 = arith.constant 0 : i32
    %c0_i32_0 = arith.constant 0 : i32
    %c0_i32_1 = arith.constant 0 : i32
    return %c0_i32, %c0_i32_0 : i32, i32
  }
  func.func @transform_20(%arg0: i32) -> (i32, i32, i32) {
    %c0_i32 = arith.constant 0 : i32
    %c0_i32_0 = arith.constant 0 : i32
    %c0_i32_1 = arith.constant 0 : i32
    return %arg0, %c0_i32, %c0_i32_0 : i32, i32, i32
  }
}

</mosaic_0001>

<llo_original>
// kernel: tpu_custom_call.1
$region0: #{tpu_custom_call.1}
  #allocation0 [shape = 'u32[]', space=smem, size = 0x4, offset = 0x4, fixed_abs, tag = 'smem constant byte address 0x4 - core index']
  #allocation1 [shape = 'u32[72,128]{1,0:T(1,128)}', space=vmem, size = 0x9000, scoped, tag = 'internal scratch']
  %s0 = inlined_call_operand.vmem [shape: f32[2,16,128], index: 0, kind: input, shape index: {}]
  %s1 = inlined_call_operand.vmem [shape: f32[2,16,1], index: 1, kind: input, shape index: {}]
  %s2 = inlined_call_operand.vmem [shape: f32[2,1,128], index: 2, kind: input, shape index: {}]
  %s3 = inlined_call_operand.vmem [shape: f32[2,1,128], index: 3, kind: input, shape index: {}]
  %s4 = inlined_call_operand.hbm [shape: f32[2,1,128], index: 4, kind: input, shape index: {}]
  %s5 = inlined_call_operand.vmem [shape: f32[2,1,128], index: 5, kind: input, shape index: {}]
  %s6 = inlined_call_operand.hbm [shape: f32[2,1,128], index: 6, kind: input, shape index: {}]
  %s7 = inlined_call_operand.vmem [shape: f32[2,1,128], index: 7, kind: input, shape index: {}]
  %s8 = inlined_call_operand.hbm [shape: f32[2,1,128], index: 8, kind: input, shape index: {}]
  %s9 = inlined_call_operand.vmem [shape: f32[2,1,128], index: 9, kind: input, shape index: {}]
  %s10 = inlined_call_operand.hbm [shape: bf16[384,128], index: 10, kind: input, shape index: {}]
  %s11 = inlined_call_operand.vmem [shape: f32[1,128], index: 11, kind: input, shape index: {}]
  %s12 = inlined_call_operand.hbm [shape: bf16[384,128], index: 12, kind: input, shape index: {}]
  %s13 = inlined_call_operand.vmem [shape: f32[1,128], index: 13, kind: input, shape index: {}]
  %s14 = inlined_call_operand.hbm [shape: bf16[384,128], index: 14, kind: input, shape index: {}]
  %s15 = inlined_call_operand.vmem [shape: f32[1,128], index: 15, kind: input, shape index: {}]
  %s16 = inlined_call_operand.hbm [shape: bf16[384,128], index: 16, kind: input, shape index: {}]
  %s17 = inlined_call_operand.vmem [shape: f32[1,128], index: 17, kind: input, shape index: {}]
  %s18 = inlined_call_operand.hbm [shape: bf16[128,128], index: 18, kind: input, shape index: {}]
  %s19 = inlined_call_operand.vmem [shape: f32[1,128], index: 19, kind: input, shape index: {}]
  %s20 = inlined_call_operand.hbm [shape: f32[2,16,128], index: 20, kind: output, shape index: {}]
  %s21 = sld [smem:[#allocation0]]
  $region145: #{tpu_custom_call.1} parent=0
    _
  %s23 = ssub.s32 1, %s21
  %s24 = scalar_select 0, %s23, %s21
  $region1: #{tpu_custom_call.1} parent=0
    #allocation2 [shape = 'u8[1024]{0}', space=vmem, size = 0x400, scoped, tag = 'input window, operand 4']
    #allocation3 [shape = 's32[2]{0}', space=sflag, size = 0x8, scoped, tag = 'scoped memory for tpu_custom_call.1']
    #allocation4 [shape = 's32[2]{0}', space=sflag, size = 0x8, scoped, tag = 'scoped memory for tpu_custom_call.1']
    #allocation5 [shape = 'u8[1024]{0}', space=vmem, size = 0x400, scoped, tag = 'input window, operand 6']
    #allocation6 [shape = 's32[2]{0}', space=sflag, size = 0x8, scoped, tag = 'scoped memory for tpu_custom_call.1']
    #allocation7 [shape = 'u8[1024]{0}', space=vmem, size = 0x400, scoped, tag = 'input window, operand 8']
    #allocation8 [shape = 'u8[98304]{0}', space=vmem, size = 0x18000, scoped, tag = 'input window, operand 10, single buffered']
    #allocation9 [shape = 's32[1]{0}', space=sflag, size = 0x4, scoped, tag = 'scoped memory for tpu_custom_call.1']
    #allocation10 [shape = 'u8[98304]{0}', space=vmem, size = 0x18000, scoped, tag = 'input window, operand 12, single buffered']
    #allocation11 [shape = 'u8[98304]{0}', space=vmem, size = 0x18000, scoped, tag = 'input window, operand 14, single buffered']
    #allocation12 [shape = 's32[1]{0}', space=sflag, size = 0x4, scoped, tag = 'scoped memory for tpu_custom_call.1']
    #allocation13 [shape = 'u8[98304]{0}', space=vmem, size = 0x18000, scoped, tag = 'input window, operand 16, single buffered']
    #allocation14 [shape = 'u8[32768]{0}', space=vmem, size = 0x8000, scoped, tag = 'input window, operand 18, single buffered']
    #allocation15 [shape = 's32[1]{0}', space=sflag, size = 0x4, scoped, tag = 'scoped memory for tpu_custom_call.1']
    #allocation16 [shape = 'u8[16384]{0}', space=vmem, size = 0x4000, scoped, tag = 'output window, operand 0']
    %25 = vsyncpa [#allocation3], 0
    %s26 = scalar_lea.sflag [#allocation3], 1
    %27 = vsyncpa %s26, 0
    %28 = vsyncpa [#allocation6], 0
    %s29 = scalar_lea.sflag [#allocation6], 1
    %30 = vsyncpa %s29, 0
    %31 = vsyncpa [#allocation9], 0
    %32 = vsyncpa [#allocation12], 0
    %33 = vsyncpa [#allocation15], 0
    %34 = vsyncpa [#allocation4], 0
    %s35 = scalar_lea.sflag [#allocation4], 1
    %36 = vsyncpa %s35, 0
    loop: start=0, step=1, limit=4
    $region2: #{tpu_custom_call.1} parent=1 // loop_pre_header
      _
    $region3: #{tpu_custom_call.1} parent=1 // loop_header
      %s38 = sphi 0, %s42
      %p39 = scmp.ge.s32.totalorder %s38, 4
      %s48 = sphi 0, %s50
      %s51 = sphi 0, %s48
      %s52 = sphi 0, %s51
      %s68 = sphi 0, %s52
      %s74 = sphi 0, %s76
      %s77 = sphi 0, %s74
      %s78 = sphi 0, %s77
      %s94 = sphi 0, %s78
      %s100 = sphi 0, %s102
      %s103 = sphi 0, %s100
      %s104 = sphi 0, %s103
      %s120 = sphi 0, %s104
      %s126 = sphi 0, %s128
      %s129 = sphi 0, %s126
      %s130 = sphi 0, %s129
      %s146 = sphi 0, %s130
      %s152 = sphi 0, %s154
      %s155 = sphi 0, %s152
      %s156 = sphi 0, %s155
      %s172 = sphi 0, %s156
      %s178 = sphi 0, %s180
      %s181 = sphi 0, %s178
      %s182 = sphi 0, %s181
      %s198 = sphi 0, %s182
      %s204 = sphi 0, %s206
      %s207 = sphi 0, %s204
      %s208 = sphi 0, %s207
      %s224 = sphi 0, %s208
      %s230 = sphi 0, %s232
      %s233 = sphi 0, %s230
      %s234 = sphi 0, %s233
      %s250 = sphi 0, %s234
      %s256 = sphi 0, %s258
      %s259 = sphi 0, %s256
      %s260 = sphi 0, %s259
      %s276 = sphi 0, %s260
      %s282 = sphi 0, %s284
      %s285 = sphi 0, %s282
      %s286 = sphi 0, %s285
      %s302 = sphi 0, %s286
      %s306 = sphi 0, %s306
      %s308 = sphi 0, %s306
      %s309 = sphi 0, %s308
      %s323 = sphi 0, %s309
      %s327 = sphi 0, %s327
      %s329 = sphi 0, %s327
      %s330 = sphi 0, %s329
      %s344 = sphi 0, %s330
      %s348 = sphi 0, %s348
      %s350 = sphi 0, %s348
      %s351 = sphi 0, %s350
      %s365 = sphi 0, %s351
      %s369 = sphi 0, %s369
      %s371 = sphi 0, %s369
      %s372 = sphi 0, %s371
      %s386 = sphi 0, %s372
      %s390 = sphi 0, %s390
      %s392 = sphi 0, %s390
      %s393 = sphi 0, %s392
      %s407 = sphi 0, %s393
      %s411 = sphi 0, %s411
      %s413 = sphi 0, %s411
      %s414 = sphi 0, %s413
      %s428 = sphi 0, %s414
      %s432 = sphi 0, %s432
      %s434 = sphi 0, %s432
      %s435 = sphi 0, %s434
      %s449 = sphi 0, %s435
      %s453 = sphi 0, %s453
      %s455 = sphi 0, %s453
      %s456 = sphi 0, %s455
      %s470 = sphi 0, %s456
      %s474 = sphi 0, %s474
      %s476 = sphi 0, %s474
      %s477 = sphi 0, %s476
      %s491 = sphi 0, %s477
      %s495 = sphi 0, %s495
      %s497 = sphi 0, %s495
      %s498 = sphi 0, %s497
      %s512 = sphi 0, %s498
      %s518 = sphi 0, %s520
      %s521 = sphi 0, %s518
      %s522 = sphi 0, %s521
      %s538 = sphi 0, %s522
    $region4: #{tpu_custom_call.1} parent=1 // loop_header_branch
      %41 = sbr.rel (%p39) target = $region8
    $region5: #{tpu_custom_call.1} parent=1 // loop_body
      %s43 = ssub.s32 %s38, 1
      %s44 = ssub.s32 %s38, 2
      %s45 = sadd.s32 %s38, 1
      %s46 = ssub.s32 %s38, %s45
      %p47 = scmp.eq.s32.totalorder %s46, 0
      %s49 = sadd.s32 %s48, 1
      %s50 = scalar_select %p47, %s48, %s49
      %p53 = pneg %p47
      %p54 = scmp.eq.s32.totalorder %s38, 1
      %p55 = por %p53, %p54
      %p56 = scmp.ne.s32.totalorder %s48, %s51
      %p57 = scmp.eq.s32.totalorder %s38, 0
      %p58 = por %p56, %p57
      %p59 = scmp.ne.s32.totalorder %s48, %s51
      %p60 = scmp.eq.s32.totalorder %s43, 1
      %p61 = por %p59, %p60
      %p62 = scmp.ne.s32.totalorder %s51, %s52
      %p63 = scmp.eq.s32.totalorder %s43, 0
      %p64 = por %p62, %p63
      %p65 = scmp.ne.s32.totalorder %s51, %s52
      %p66 = scmp.eq.s32.totalorder %s44, 1
      %p67 = por %p65, %p66
      %p69 = scmp.ne.s32.totalorder %s52, %s68
      %p70 = scmp.eq.s32.totalorder %s44, 0
      %p71 = por %p69, %p70
      %s72 = ssub.s32 %s38, %s45
      %p73 = scmp.eq.s32.totalorder %s72, 0
      %s75 = sadd.s32 %s74, 1
      %s76 = scalar_select %p73, %s74, %s75
      %p79 = pneg %p73
      %p80 = scmp.eq.s32.totalorder %s38, 1
      %p81 = por %p79, %p80
      %p82 = scmp.ne.s32.totalorder %s74, %s77
      %p83 = scmp.eq.s32.totalorder %s38, 0
      %p84 = por %p82, %p83
      %p85 = scmp.ne.s32.totalorder %s74, %s77
      %p86 = scmp.eq.s32.totalorder %s43, 1
      %p87 = por %p85, %p86
      %p88 = scmp.ne.s32.totalorder %s77, %s78
      %p89 = scmp.eq.s32.totalorder %s43, 0
      %p90 = por %p88, %p89
      %p91 = scmp.ne.s32.totalorder %s77, %s78
      %p92 = scmp.eq.s32.totalorder %s44, 1
      %p93 = por %p91, %p92
      %p95 = scmp.ne.s32.totalorder %s78, %s94
      %p96 = scmp.eq.s32.totalorder %s44, 0
      %p97 = por %p95, %p96
      %s98 = ssub.s32 %s38, %s45
      %p99 = scmp.eq.s32.totalorder %s98, 0
      %s101 = sadd.s32 %s100, 1
      %s102 = scalar_select %p99, %s100, %s101
      %p105 = pneg %p99
      %p106 = scmp.eq.s32.totalorder %s38, 1
      %p107 = por %p105, %p106
      %p108 = scmp.ne.s32.totalorder %s100, %s103
      %p109 = scmp.eq.s32.totalorder %s38, 0
      %p110 = por %p108, %p109
      %p111 = scmp.ne.s32.totalorder %s100, %s103
      %p112 = scmp.eq.s32.totalorder %s43, 1
      %p113 = por %p111, %p112
      %p114 = scmp.ne.s32.totalorder %s103, %s104
      %p115 = scmp.eq.s32.totalorder %s43, 0
      %p116 = por %p114, %p115
      %p117 = scmp.ne.s32.totalorder %s103, %s104
      %p118 = scmp.eq.s32.totalorder %s44, 1
      %p119 = por %p117, %p118
      %p121 = scmp.ne.s32.totalorder %s104, %s120
      %p122 = scmp.eq.s32.totalorder %s44, 0
      %p123 = por %p121, %p122
      %s124 = ssub.s32 %s38, %s45
      %p125 = scmp.eq.s32.totalorder %s124, 0
      %s127 = sadd.s32 %s126, 1
      %s128 = scalar_select %p125, %s126, %s127
      %p131 = pneg %p125
      %p132 = scmp.eq.s32.totalorder %s38, 1
      %p133 = por %p131, %p132
      %p134 = scmp.ne.s32.totalorder %s126, %s129
      %p135 = scmp.eq.s32.totalorder %s38, 0
      %p136 = por %p134, %p135
      %p137 = scmp.ne.s32.totalorder %s126, %s129
      %p138 = scmp.eq.s32.totalorder %s43, 1
      %p139 = por %p137, %p138
      %p140 = scmp.ne.s32.totalorder %s129, %s130
      %p141 = scmp.eq.s32.totalorder %s43, 0
      %p142 = por %p140, %p141
      %p143 = scmp.ne.s32.totalorder %s129, %s130
      %p144 = scmp.eq.s32.totalorder %s44, 1
      %p145 = por %p143, %p144
      %p147 = scmp.ne.s32.totalorder %s130, %s146
      %p148 = scmp.eq.s32.totalorder %s44, 0
      %p149 = por %p147, %p148
      %s150 = ssub.s32 %s38, %s45
      %p151 = scmp.eq.s32.totalorder %s150, 0
      %s153 = sadd.s32 %s152, 1
      %s154 = scalar_select %p151, %s152, %s153
      %p157 = pneg %p151
      %p158 = scmp.eq.s32.totalorder %s38, 1
      %p159 = por %p157, %p158
      %p160 = scmp.ne.s32.totalorder %s152, %s155
      %p161 = scmp.eq.s32.totalorder %s38, 0
      %p162 = por %p160, %p161
      %p163 = scmp.ne.s32.totalorder %s152, %s155
      %p164 = scmp.eq.s32.totalorder %s43, 1
      %p165 = por %p163, %p164
      %p166 = scmp.ne.s32.totalorder %s155, %s156
      %p167 = scmp.eq.s32.totalorder %s43, 0
      %p168 = por %p166, %p167
      %p169 = scmp.ne.s32.totalorder %s155, %s156
      %p170 = scmp.eq.s32.totalorder %s44, 1
      %p171 = por %p169, %p170
      %p173 = scmp.ne.s32.totalorder %s156, %s172
      %p174 = scmp.eq.s32.totalorder %s44, 0
      %p175 = por %p173, %p174
      %s176 = ssub.s32 %s38, %s45
      %p177 = scmp.eq.s32.totalorder %s176, 0
      %s179 = sadd.s32 %s178, 1
      %s180 = scalar_select %p177, %s178, %s179
      %p183 = pneg %p177
      %p184 = scmp.eq.s32.totalorder %s38, 1
      %p185 = por %p183, %p184
      %p186 = scmp.ne.s32.totalorder %s178, %s181
      %p187 = scmp.eq.s32.totalorder %s38, 0
      %p188 = por %p186, %p187
      %p189 = scmp.ne.s32.totalorder %s178, %s181
      %p190 = scmp.eq.s32.totalorder %s43, 1
      %p191 = por %p189, %p190
      %p192 = scmp.ne.s32.totalorder %s181, %s182
      %p193 = scmp.eq.s32.totalorder %s43, 0
      %p194 = por %p192, %p193
      %p195 = scmp.ne.s32.totalorder %s181, %s182
      %p196 = scmp.eq.s32.totalorder %s44, 1
      %p197 = por %p195, %p196
      %p199 = scmp.ne.s32.totalorder %s182, %s198
      %p200 = scmp.eq.s32.totalorder %s44, 0
      %p201 = por %p199, %p200
      %s202 = ssub.s32 %s38, %s45
      %p203 = scmp.eq.s32.totalorder %s202, 0
      %s205 = sadd.s32 %s204, 1
      %s206 = scalar_select %p203, %s204, %s205
      %p209 = pneg %p203
      %p210 = scmp.eq.s32.totalorder %s38, 1
      %p211 = por %p209, %p210
      %p212 = scmp.ne.s32.totalorder %s204, %s207
      %p213 = scmp.eq.s32.totalorder %s38, 0
      %p214 = por %p212, %p213
      %p215 = scmp.ne.s32.totalorder %s204, %s207
      %p216 = scmp.eq.s32.totalorder %s43, 1
      %p217 = por %p215, %p216
      %p218 = scmp.ne.s32.totalorder %s207, %s208
      %p219 = scmp.eq.s32.totalorder %s43, 0
      %p220 = por %p218, %p219
      %p221 = scmp.ne.s32.totalorder %s207, %s208
      %p222 = scmp.eq.s32.totalorder %s44, 1
      %p223 = por %p221, %p222
      %p225 = scmp.ne.s32.totalorder %s208, %s224
      %p226 = scmp.eq.s32.totalorder %s44, 0
      %p227 = por %p225, %p226
      %s228 = ssub.s32 %s38, %s45
      %p229 = scmp.eq.s32.totalorder %s228, 0
      %s231 = sadd.s32 %s230, 1
      %s232 = scalar_select %p229, %s230, %s231
      %p235 = pneg %p229
      %p236 = scmp.eq.s32.totalorder %s38, 1
      %p237 = por %p235, %p236
      %p238 = scmp.ne.s32.totalorder %s230, %s233
      %p239 = scmp.eq.s32.totalorder %s38, 0
      %p240 = por %p238, %p239
      %p241 = scmp.ne.s32.totalorder %s230, %s233
      %p242 = scmp.eq.s32.totalorder %s43, 1
      %p243 = por %p241, %p242
      %p244 = scmp.ne.s32.totalorder %s233, %s234
      %p245 = scmp.eq.s32.totalorder %s43, 0
      %p246 = por %p244, %p245
      %p247 = scmp.ne.s32.totalorder %s233, %s234
      %p248 = scmp.eq.s32.totalorder %s44, 1
      %p249 = por %p247, %p248
      %p251 = scmp.ne.s32.totalorder %s234, %s250
      %p252 = scmp.eq.s32.totalorder %s44, 0
      %p253 = por %p251, %p252
      %s254 = ssub.s32 %s38, %s45
      %p255 = scmp.eq.s32.totalorder %s254, 0
      %s257 = sadd.s32 %s256, 1
      %s258 = scalar_select %p255, %s256, %s257
      %p261 = pneg %p255
      %p262 = scmp.eq.s32.totalorder %s38, 1
      %p263 = por %p261, %p262
      %p264 = scmp.ne.s32.totalorder %s256, %s259
      %p265 = scmp.eq.s32.totalorder %s38, 0
      %p266 = por %p264, %p265
      %p267 = scmp.ne.s32.totalorder %s256, %s259
      %p268 = scmp.eq.s32.totalorder %s43, 1
      %p269 = por %p267, %p268
      %p270 = scmp.ne.s32.totalorder %s259, %s260
      %p271 = scmp.eq.s32.totalorder %s43, 0
      %p272 = por %p270, %p271
      %p273 = scmp.ne.s32.totalorder %s259, %s260
      %p274 = scmp.eq.s32.totalorder %s44, 1
      %p275 = por %p273, %p274
      %p277 = scmp.ne.s32.totalorder %s260, %s276
      %p278 = scmp.eq.s32.totalorder %s44, 0
      %p279 = por %p277, %p278
      %s280 = ssub.s32 %s38, %s45
      %p281 = scmp.eq.s32.totalorder %s280, 0
      %s283 = sadd.s32 %s282, 1
      %s284 = scalar_select %p281, %s282, %s283
      %p287 = pneg %p281
      %p288 = scmp.eq.s32.totalorder %s38, 1
      %p289 = por %p287, %p288
      %p290 = scmp.ne.s32.totalorder %s282, %s285
      %p291 = scmp.eq.s32.totalorder %s38, 0
      %p292 = por %p290, %p291
      %p293 = scmp.ne.s32.totalorder %s282, %s285
      %p294 = scmp.eq.s32.totalorder %s43, 1
      %p295 = por %p293, %p294
      %p296 = scmp.ne.s32.totalorder %s285, %s286
      %p297 = scmp.eq.s32.totalorder %s43, 0
      %p298 = por %p296, %p297
      %p299 = scmp.ne.s32.totalorder %s285, %s286
      %p300 = scmp.eq.s32.totalorder %s44, 1
      %p301 = por %p299, %p300
      %p303 = scmp.ne.s32.totalorder %s286, %s302
      %p304 = scmp.eq.s32.totalorder %s44, 0
      %p305 = por %p303, %p304
      %s307 = sadd.s32 %s306, 1
      %p310 = scmp.eq.s32.totalorder %s38, 1
      %p311 = scmp.ne.s32.totalorder %s306, %s308
      %p312 = scmp.eq.s32.totalorder %s38, 0
      %p313 = por %p311, %p312
      %p314 = scmp.ne.s32.totalorder %s306, %s308
      %p315 = scmp.eq.s32.totalorder %s43, 1
      %p316 = por %p314, %p315
      %p317 = scmp.ne.s32.totalorder %s308, %s309
      %p318 = scmp.eq.s32.totalorder %s43, 0
      %p319 = por %p317, %p318
      %p320 = scmp.ne.s32.totalorder %s308, %s309
      %p321 = scmp.eq.s32.totalorder %s44, 1
      %p322 = por %p320, %p321
      %p324 = scmp.ne.s32.totalorder %s309, %s323
      %p325 = scmp.eq.s32.totalorder %s44, 0
      %p326 = por %p324, %p325
      %s328 = sadd.s32 %s327, 1
      %p331 = scmp.eq.s32.totalorder %s38, 1
      %p332 = scmp.ne.s32.totalorder %s327, %s329
      %p333 = scmp.eq.s32.totalorder %s38, 0
      %p334 = por %p332, %p333
      %p335 = scmp.ne.s32.totalorder %s327, %s329
      %p336 = scmp.eq.s32.totalorder %s43, 1
      %p337 = por %p335, %p336
      %p338 = scmp.ne.s32.totalorder %s329, %s330
      %p339 = scmp.eq.s32.totalorder %s43, 0
      %p340 = por %p338, %p339
      %p341 = scmp.ne.s32.totalorder %s329, %s330
      %p342 = scmp.eq.s32.totalorder %s44, 1
      %p343 = por %p341, %p342
      %p345 = scmp.ne.s32.totalorder %s330, %s344
      %p346 = scmp.eq.s32.totalorder %s44, 0
      %p347 = por %p345, %p346
      %s349 = sadd.s32 %s348, 1
      %p352 = scmp.eq.s32.totalorder %s38, 1
      %p353 = scmp.ne.s32.totalorder %s348, %s350
      %p354 = scmp.eq.s32.totalorder %s38, 0
      %p355 = por %p353, %p354
      %p356 = scmp.ne.s32.totalorder %s348, %s350
      %p357 = scmp.eq.s32.totalorder %s43, 1
      %p358 = por %p356, %p357
      %p359 = scmp.ne.s32.totalorder %s350, %s351
      %p360 = scmp.eq.s32.totalorder %s43, 0
      %p361 = por %p359, %p360
      %p362 = scmp.ne.s32.totalorder %s350, %s351
      %p363 = scmp.eq.s32.totalorder %s44, 1
      %p364 = por %p362, %p363
      %p366 = scmp.ne.s32.totalorder %s351, %s365
      %p367 = scmp.eq.s32.totalorder %s44, 0
      %p368 = por %p366, %p367
      %s370 = sadd.s32 %s369, 1
      %p373 = scmp.eq.s32.totalorder %s38, 1
      %p374 = scmp.ne.s32.totalorder %s369, %s371
      %p375 = scmp.eq.s32.totalorder %s38, 0
      %p376 = por %p374, %p375
      %p377 = scmp.ne.s32.totalorder %s369, %s371
      %p378 = scmp.eq.s32.totalorder %s43, 1
      %p379 = por %p377, %p378
      %p380 = scmp.ne.s32.totalorder %s371, %s372
      %p381 = scmp.eq.s32.totalorder %s43, 0
      %p382 = por %p380, %p381
      %p383 = scmp.ne.s32.totalorder %s371, %s372
      %p384 = scmp.eq.s32.totalorder %s44, 1
      %p385 = por %p383, %p384
      %p387 = scmp.ne.s32.totalorder %s372, %s386
      %p388 = scmp.eq.s32.totalorder %s44, 0
      %p389 = por %p387, %p388
      %s391 = sadd.s32 %s390, 1
      %p394 = scmp.eq.s32.totalorder %s38, 1
      %p395 = scmp.ne.s32.totalorder %s390, %s392
      %p396 = scmp.eq.s32.totalorder %s38, 0
      %p397 = por %p395, %p396
      %p398 = scmp.ne.s32.totalorder %s390, %s392
      %p399 = scmp.eq.s32.totalorder %s43, 1
      %p400 = por %p398, %p399
      %p401 = scmp.ne.s32.totalorder %s392, %s393
      %p402 = scmp.eq.s32.totalorder %s43, 0
      %p403 = por %p401, %p402
      %p404 = scmp.ne.s32.totalorder %s392, %s393
      %p405 = scmp.eq.s32.totalorder %s44, 1
      %p406 = por %p404, %p405
      %p408 = scmp.ne.s32.totalorder %s393, %s407
      %p409 = scmp.eq.s32.totalorder %s44, 0
      %p410 = por %p408, %p409
      %s412 = sadd.s32 %s411, 1
      %p415 = scmp.eq.s32.totalorder %s38, 1
      %p416 = scmp.ne.s32.totalorder %s411, %s413
      %p417 = scmp.eq.s32.totalorder %s38, 0
      %p418 = por %p416, %p417
      %p419 = scmp.ne.s32.totalorder %s411, %s413
      %p420 = scmp.eq.s32.totalorder %s43, 1
      %p421 = por %p419, %p420
      %p422 = scmp.ne.s32.totalorder %s413, %s414
      %p423 = scmp.eq.s32.totalorder %s43, 0
      %p424 = por %p422, %p423
      %p425 = scmp.ne.s32.totalorder %s413, %s414
      %p426 = scmp.eq.s32.totalorder %s44, 1
      %p427 = por %p425, %p426
      %p429 = scmp.ne.s32.totalorder %s414, %s428
      %p430 = scmp.eq.s32.totalorder %s44, 0
      %p431 = por %p429, %p430
      %s433 = sadd.s32 %s432, 1
      %p436 = scmp.eq.s32.totalorder %s38, 1
      %p437 = scmp.ne.s32.totalorder %s432, %s434
      %p438 = scmp.eq.s32.totalorder %s38, 0
      %p439 = por %p437, %p438
      %p440 = scmp.ne.s32.totalorder %s432, %s434
      %p441 = scmp.eq.s32.totalorder %s43, 1
      %p442 = por %p440, %p441
      %p443 = scmp.ne.s32.totalorder %s434, %s435
      %p444 = scmp.eq.s32.totalorder %s43, 0
      %p445 = por %p443, %p444
      %p446 = scmp.ne.s32.totalorder %s434, %s435
      %p447 = scmp.eq.s32.totalorder %s44, 1
      %p448 = por %p446, %p447
      %p450 = scmp.ne.s32.totalorder %s435, %s449
      %p451 = scmp.eq.s32.totalorder %s44, 0
      %p452 = por %p450, %p451
      %s454 = sadd.s32 %s453, 1
      %p457 = scmp.eq.s32.totalorder %s38, 1
      %p458 = scmp.ne.s32.totalorder %s453, %s455
      %p459 = scmp.eq.s32.totalorder %s38, 0
      %p460 = por %p458, %p459
      %p461 = scmp.ne.s32.totalorder %s453, %s455
      %p462 = scmp.eq.s32.totalorder %s43, 1
      %p463 = por %p461, %p462
      %p464 = scmp.ne.s32.totalorder %s455, %s456
      %p465 = scmp.eq.s32.totalorder %s43, 0
      %p466 = por %p464, %p465
      %p467 = scmp.ne.s32.totalorder %s455, %s456
      %p468 = scmp.eq.s32.totalorder %s44, 1
      %p469 = por %p467, %p468
      %p471 = scmp.ne.s32.totalorder %s456, %s470
      %p472 = scmp.eq.s32.totalorder %s44, 0
      %p473 = por %p471, %p472
      %s475 = sadd.s32 %s474, 1
      %p478 = scmp.eq.s32.totalorder %s38, 1
      %p479 = scmp.ne.s32.totalorder %s474, %s476
      %p480 = scmp.eq.s32.totalorder %s38, 0
      %p481 = por %p479, %p480
      %p482 = scmp.ne.s32.totalorder %s474, %s476
      %p483 = scmp.eq.s32.totalorder %s43, 1
      %p484 = por %p482, %p483
      %p485 = scmp.ne.s32.totalorder %s476, %s477
      %p486 = scmp.eq.s32.totalorder %s43, 0
      %p487 = por %p485, %p486
      %p488 = scmp.ne.s32.totalorder %s476, %s477
      %p489 = scmp.eq.s32.totalorder %s44, 1
      %p490 = por %p488, %p489
      %p492 = scmp.ne.s32.totalorder %s477, %s491
      %p493 = scmp.eq.s32.totalorder %s44, 0
      %p494 = por %p492, %p493
      %s496 = sadd.s32 %s495, 1
      %p499 = scmp.eq.s32.totalorder %s38, 1
      %p500 = scmp.ne.s32.totalorder %s495, %s497
      %p501 = scmp.eq.s32.totalorder %s38, 0
      %p502 = por %p500, %p501
      %p503 = scmp.ne.s32.totalorder %s495, %s497
      %p504 = scmp.eq.s32.totalorder %s43, 1
      %p505 = por %p503, %p504
      %p506 = scmp.ne.s32.totalorder %s497, %s498
      %p507 = scmp.eq.s32.totalorder %s43, 0
      %p508 = por %p506, %p507
      %p509 = scmp.ne.s32.totalorder %s497, %s498
      %p510 = scmp.eq.s32.totalorder %s44, 1
      %p511 = por %p509, %p510
      %p513 = scmp.ne.s32.totalorder %s498, %s512
      %p514 = scmp.eq.s32.totalorder %s44, 0
      %p515 = por %p513, %p514
      %s516 = ssub.s32 %s38, %s45
      %p517 = scmp.eq.s32.totalorder %s516, 0
      %s519 = sadd.s32 %s518, 1
      %s520 = scalar_select %p517, %s518, %s519
      %p523 = pneg %p517
      %p524 = scmp.eq.s32.totalorder %s38, 1
      %p525 = por %p523, %p524
      %p526 = scmp.ne.s32.totalorder %s518, %s521
      %p527 = scmp.eq.s32.totalorder %s38, 0
      %p528 = por %p526, %p527
      %p529 = scmp.ne.s32.totalorder %s518, %s521
      %p530 = scmp.eq.s32.totalorder %s43, 1
      %p531 = por %p529, %p530
      %p532 = scmp.ne.s32.totalorder %s521, %s522
      %p533 = scmp.eq.s32.totalorder %s43, 0
      %p534 = por %p532, %p533
      %p535 = scmp.ne.s32.totalorder %s521, %s522
      %p536 = scmp.eq.s32.totalorder %s44, 1
      %p537 = por %p535, %p536
      %p539 = scmp.ne.s32.totalorder %s522, %s538
      %p540 = scmp.eq.s32.totalorder %s44, 0
      %p541 = por %p539, %p540
      %p542 = scmp.le.s32.totalorder 1, %s38
      %p543 = scmp.lt.s32.totalorder %s38, 3
      %p544 = pnand %p542, %p543
      %p545 = pneg %p544
      // Predicated region
      $region9: #{tpu_custom_call.1} parent=5 // pred_check
        _
      $region10: #{tpu_custom_call.1} parent=5 // pred_check_branch
        %547 = sbr.rel (%p544) target = $region12
      $region11: #{tpu_custom_call.1} parent=5 // pred_region
        %s548 = ssub.s32 %s38, 1
        // Predicated region
        $region13: #{tpu_custom_call.1} parent=11 // pred_check
          %p549 = pneg %p319
        $region14: #{tpu_custom_call.1} parent=11 // pred_check_branch
          %551 = sbr.rel (%p549) target = $region16
        $region15: #{tpu_custom_call.1} parent=11 // pred_region
          %553 = vsyncadd [#allocation9], 0
          %s554 = sshll.u32 %s10, 4
          %s555 = int_to_ptr.hbm [resolvable:$true] %s554
          %s556 = sshll.u32 [#allocation8], 4
          %s557 = int_to_ptr.vmem [resolvable:$true] %s556
          %562 = dma.hbm_to_vmem [thread:$0]  %s555, 3072, %s557, [#allocation9], 64, 64, 4
        $region16: #{tpu_custom_call.1} parent=11 // pred_fallthru
          _
        // Predicated region
        $region17: #{tpu_custom_call.1} parent=11 // pred_check
          %p563 = pneg %p340
        $region18: #{tpu_custom_call.1} parent=11 // pred_check_branch
          %565 = sbr.rel (%p563) target = $region20
        $region19: #{tpu_custom_call.1} parent=11 // pred_region
          _
        $region20: #{tpu_custom_call.1} parent=11 // pred_fallthru
          _
        // Predicated region
        $region21: #{tpu_custom_call.1} parent=11 // pred_check
          %p566 = pneg %p361
        $region22: #{tpu_custom_call.1} parent=11 // pred_check_branch
          %568 = sbr.rel (%p566) target = $region24
        $region23: #{tpu_custom_call.1} parent=11 // pred_region
          %570 = vsyncadd [#allocation9], 0
          %s571 = sshll.u32 %s12, 4
          %s572 = int_to_ptr.hbm [resolvable:$true] %s571
          %s573 = sshll.u32 [#allocation10], 4
          %s574 = int_to_ptr.vmem [resolvable:$true] %s573
          %579 = dma.hbm_to_vmem [thread:$0]  %s572, 3072, %s574, [#allocation9], 64, 64, 4
        $region24: #{tpu_custom_call.1} parent=11 // pred_fallthru
          _
        // Predicated region
        $region25: #{tpu_custom_call.1} parent=11 // pred_check
          %p580 = pneg %p382
        $region26: #{tpu_custom_call.1} parent=11 // pred_check_branch
          %582 = sbr.rel (%p580) target = $region28
        $region27: #{tpu_custom_call.1} parent=11 // pred_region
          _
        $region28: #{tpu_custom_call.1} parent=11 // pred_fallthru
          _
        // Predicated region
        $region29: #{tpu_custom_call.1} parent=11 // pred_check
          %p583 = pneg %p403
        $region30: #{tpu_custom_call.1} parent=11 // pred_check_branch
          %585 = sbr.rel (%p583) target = $region32
        $region31: #{tpu_custom_call.1} parent=11 // pred_region
          %587 = vsyncadd [#allocation12], 0
          %s588 = sshll.u32 %s14, 4
          %s589 = int_to_ptr.hbm [resolvable:$true] %s588
          %s590 = sshll.u32 [#allocation11], 4
          %s591 = int_to_ptr.vmem [resolvable:$true] %s590
          %596 = dma.hbm_to_vmem [thread:$0]  %s589, 3072, %s591, [#allocation12], 64, 64, 4
        $region32: #{tpu_custom_call.1} parent=11 // pred_fallthru
          _
        // Predicated region
        $region33: #{tpu_custom_call.1} parent=11 // pred_check
          %p597 = pneg %p424
        $region34: #{tpu_custom_call.1} parent=11 // pred_check_branch
          %599 = sbr.rel (%p597) target = $region36
        $region35: #{tpu_custom_call.1} parent=11 // pred_region
          _
        $region36: #{tpu_custom_call.1} parent=11 // pred_fallthru
          _
        // Predicated region
        $region37: #{tpu_custom_call.1} parent=11 // pred_check
          %p600 = pneg %p445
        $region38: #{tpu_custom_call.1} parent=11 // pred_check_branch
          %602 = sbr.rel (%p600) target = $region40
        $region39: #{tpu_custom_call.1} parent=11 // pred_region
          %604 = vsyncadd [#allocation12], 0
          %s605 = sshll.u32 %s16, 4
          %s606 = int_to_ptr.hbm [resolvable:$true] %s605
          %s607 = sshll.u32 [#allocation13], 4
          %s608 = int_to_ptr.vmem [resolvable:$true] %s607
          %613 = dma.hbm_to_vmem [thread:$0]  %s606, 3072, %s608, [#allocation12], 64, 64, 4
        $region40: #{tpu_custom_call.1} parent=11 // pred_fallthru
          _
        // Predicated region
        $region41: #{tpu_custom_call.1} parent=11 // pred_check
          %p614 = pneg %p466
        $region42: #{tpu_custom_call.1} parent=11 // pred_check_branch
          %616 = sbr.rel (%p614) target = $region44
        $region43: #{tpu_custom_call.1} parent=11 // pred_region
          _
        $region44: #{tpu_custom_call.1} parent=11 // pred_fallthru
          _
        // Predicated region
        $region45: #{tpu_custom_call.1} parent=11 // pred_check
          %p617 = pneg %p487
        $region46: #{tpu_custom_call.1} parent=11 // pred_check_branch
          %619 = sbr.rel (%p617) target = $region48
        $region47: #{tpu_custom_call.1} parent=11 // pred_region
          %621 = vsyncadd [#allocation15], 0
          %s622 = sshll.u32 %s18, 4
          %s623 = int_to_ptr.hbm [resolvable:$true] %s622
          %s624 = sshll.u32 [#allocation14], 4
          %s625 = int_to_ptr.vmem [resolvable:$true] %s624
          %630 = dma.hbm_to_vmem [thread:$0]  %s623, 1024, %s625, [#allocation15], 64, 64, 4
        $region48: #{tpu_custom_call.1} parent=11 // pred_fallthru
          _
        // Predicated region
        $region49: #{tpu_custom_call.1} parent=11 // pred_check
          %p631 = pneg %p508
        $region50: #{tpu_custom_call.1} parent=11 // pred_check_branch
          %633 = sbr.rel (%p631) target = $region52
        $region51: #{tpu_custom_call.1} parent=11 // pred_region
          _
        $region52: #{tpu_custom_call.1} parent=11 // pred_fallthru
          _
      $region12: #{tpu_custom_call.1} parent=5 // pred_fallthru
        _
      %p634 = scmp.lt.s32.totalorder %s38, 2
      // Predicated region
      $region53: #{tpu_custom_call.1} parent=5 // pred_check
        %p635 = pneg %p634
      $region54: #{tpu_custom_call.1} parent=5 // pred_check_branch
        %637 = sbr.rel (%p635) target = $region56
      $region55: #{tpu_custom_call.1} parent=5 // pred_region
        // Predicated region
        $region57: #{tpu_custom_call.1} parent=55 // pred_check
          %p638 = pneg %p58
        $region58: #{tpu_custom_call.1} parent=55 // pred_check_branch
          %640 = sbr.rel (%p638) target = $region60
        $region59: #{tpu_custom_call.1} parent=55 // pred_region
          %p641 = scmp.lt.s32.totalorder %s38, 1
          %s642 = scalar_select %p641, %s38, 1
          %s643 = smul.addr %s642, 2
          %s644 = smul.addr %s643, 8
          %s645 = scalar_lea.vmem %s0, %s644
        $region60: #{tpu_custom_call.1} parent=55 // pred_fallthru
          _
        // Predicated region
        $region61: #{tpu_custom_call.1} parent=55 // pred_check
          %p646 = pneg %p84
        $region62: #{tpu_custom_call.1} parent=55 // pred_check_branch
          %648 = sbr.rel (%p646) target = $region64
        $region63: #{tpu_custom_call.1} parent=55 // pred_region
          %p649 = scmp.lt.s32.totalorder %s38, 1
          %s650 = scalar_select %p649, %s38, 1
          %s651 = smul.addr %s650, 2
          %s652 = smul.addr %s651, 8
          %s653 = scalar_lea.vmem %s1, %s652
        $region64: #{tpu_custom_call.1} parent=55 // pred_fallthru
          _
        // Predicated region
        $region65: #{tpu_custom_call.1} parent=55 // pred_check
          %p654 = pneg %p110
        $region66: #{tpu_custom_call.1} parent=55 // pred_check_branch
          %656 = sbr.rel (%p654) target = $region68
        $region67: #{tpu_custom_call.1} parent=55 // pred_region
          %p657 = scmp.lt.s32.totalorder %s38, 1
          %s658 = scalar_select %p657, %s38, 1
          %s659 = scalar_lea.vmem %s2, %s658
        $region68: #{tpu_custom_call.1} parent=55 // pred_fallthru
          _
        // Predicated region
        $region69: #{tpu_custom_call.1} parent=55 // pred_check
          %p660 = pneg %p136
        $region70: #{tpu_custom_call.1} parent=55 // pred_check_branch
          %662 = sbr.rel (%p660) target = $region72
        $region71: #{tpu_custom_call.1} parent=55 // pred_region
          %p663 = scmp.lt.s32.totalorder %s38, 1
          %s664 = scalar_select %p663, %s38, 1
          %s665 = scalar_lea.vmem %s3, %s664
        $region72: #{tpu_custom_call.1} parent=55 // pred_fallthru
          _
        // Predicated region
        $region73: #{tpu_custom_call.1} parent=55 // pred_check
          %p666 = pneg %p162
        $region74: #{tpu_custom_call.1} parent=55 // pred_check_branch
          %668 = sbr.rel (%p666) target = $region76
        $region75: #{tpu_custom_call.1} parent=55 // pred_region
          %s669 = sand.u32 %s152, 1
          %s670 = scalar_lea.sflag [#allocation3], %s669
          %s671 = sand.u32 %s152, 1
          %s672 = scalar_lea.vmem [#allocation2], %s671
          %674 = vsyncadd %s670, 0
          %s675 = scalar_lea.hbm %s4, %s38
          %s677 = sshll.u32 %s675, 4
          %s678 = int_to_ptr.hbm [resolvable:$true] %s677
          %s679 = sshll.u32 %s672, 4
          %s680 = int_to_ptr.vmem [resolvable:$true] %s679
          %682 = dma.hbm_to_vmem [thread:$0]  %s678, 16, %s680, %s670
        $region76: #{tpu_custom_call.1} parent=55 // pred_fallthru
          _
        // Predicated region
        $region77: #{tpu_custom_call.1} parent=55 // pred_check
          %p683 = pneg %p188
        $region78: #{tpu_custom_call.1} parent=55 // pred_check_branch
          %685 = sbr.rel (%p683) target = $region80
        $region79: #{tpu_custom_call.1} parent=55 // pred_region
          %p686 = scmp.lt.s32.totalorder %s38, 1
          %s687 = scalar_select %p686, %s38, 1
          %s688 = scalar_lea.vmem %s5, %s687
        $region80: #{tpu_custom_call.1} parent=55 // pred_fallthru
          _
        // Predicated region
        $region81: #{tpu_custom_call.1} parent=55 // pred_check
          %p689 = pneg %p214
        $region82: #{tpu_custom_call.1} parent=55 // pred_check_branch
          %691 = sbr.rel (%p689) target = $region84
        $region83: #{tpu_custom_call.1} parent=55 // pred_region
          %s692 = sand.u32 %s38, 1
          %s693 = scalar_lea.sflag [#allocation6], %s692
          %s694 = sand.u32 %s204, 1
          %s695 = scalar_lea.vmem [#allocation5], %s694
          %697 = vsyncadd %s693, 0
          %s698 = scalar_lea.hbm %s6, %s38
          %s700 = sshll.u32 %s698, 4
          %s701 = int_to_ptr.hbm [resolvable:$true] %s700
          %s702 = sshll.u32 %s695, 4
          %s703 = int_to_ptr.vmem [resolvable:$true] %s702
          %705 = dma.hbm_to_vmem [thread:$0]  %s701, 16, %s703, %s693
        $region84: #{tpu_custom_call.1} parent=55 // pred_fallthru
          _
        // Predicated region
        $region85: #{tpu_custom_call.1} parent=55 // pred_check
          %p706 = pneg %p240
        $region86: #{tpu_custom_call.1} parent=55 // pred_check_branch
          %708 = sbr.rel (%p706) target = $region88
        $region87: #{tpu_custom_call.1} parent=55 // pred_region
          %p709 = scmp.lt.s32.totalorder %s38, 1
          %s710 = scalar_select %p709, %s38, 1
          %s711 = scalar_lea.vmem %s7, %s710
        $region88: #{tpu_custom_call.1} parent=55 // pred_fallthru
          _
        // Predicated region
        $region89: #{tpu_custom_call.1} parent=55 // pred_check
          %p712 = pneg %p266
        $region90: #{tpu_custom_call.1} parent=55 // pred_check_branch
          %714 = sbr.rel (%p712) target = $region92
        $region91: #{tpu_custom_call.1} parent=55 // pred_region
          %s715 = sand.u32 %s38, 1
          %s716 = scalar_lea.sflag [#allocation6], %s715
          %s717 = sand.u32 %s256, 1
          %s718 = scalar_lea.vmem [#allocation7], %s717
          %720 = vsyncadd %s716, 0
          %s721 = scalar_lea.hbm %s8, %s38
          %s723 = sshll.u32 %s721, 4
          %s724 = int_to_ptr.hbm [resolvable:$true] %s723
          %s725 = sshll.u32 %s718, 4
          %s726 = int_to_ptr.vmem [resolvable:$true] %s725
          %728 = dma.hbm_to_vmem [thread:$0]  %s724, 16, %s726, %s716
        $region92: #{tpu_custom_call.1} parent=55 // pred_fallthru
          _
        // Predicated region
        $region93: #{tpu_custom_call.1} parent=55 // pred_check
          %p729 = pneg %p292
        $region94: #{tpu_custom_call.1} parent=55 // pred_check_branch
          %731 = sbr.rel (%p729) target = $region96
        $region95: #{tpu_custom_call.1} parent=55 // pred_region
          %p732 = scmp.lt.s32.totalorder %s38, 1
          %s733 = scalar_select %p732, %s38, 1
          %s734 = scalar_lea.vmem %s9, %s733
        $region96: #{tpu_custom_call.1} parent=55 // pred_fallthru
          _
      $region56: #{tpu_custom_call.1} parent=5 // pred_fallthru
        _
      %p735 = scmp.le.s32.totalorder 1, %s38
      %p736 = scmp.lt.s32.totalorder %s38, 3
      %p737 = pnand %p735, %p736
      %p738 = pneg %p737
      // Predicated region
      $region97: #{tpu_custom_call.1} parent=5 // pred_check
        _
      $region98: #{tpu_custom_call.1} parent=5 // pred_check_branch
        %740 = sbr.rel (%p737) target = $region100
      $region99: #{tpu_custom_call.1} parent=5 // pred_region
        %s741 = ssub.s32 %s38, 1
        %s742 = sand.u32 %s155, 1
        %s743 = scalar_lea.sflag [#allocation3], %s742
        %s744 = sand.u32 %s155, 1
        %s745 = scalar_lea.vmem [#allocation2], %s744
        // Predicated region
        $region101: #{tpu_custom_call.1} parent=99 // pred_check
          %p746 = pneg %p168
        $region102: #{tpu_custom_call.1} parent=99 // pred_check_branch
          %748 = sbr.rel (%p746) target = $region104
        $region103: #{tpu_custom_call.1} parent=99 // pred_region
          %750 = dma.done %s743, 16
        $region104: #{tpu_custom_call.1} parent=99 // pred_fallthru
          _
        %s751 = sand.u32 %s43, 1
        %s752 = scalar_lea.sflag [#allocation6], %s751
        %s753 = sand.u32 %s207, 1
        %s754 = scalar_lea.vmem [#allocation5], %s753
        // Predicated region
        $region105: #{tpu_custom_call.1} parent=99 // pred_check
          %p755 = pneg %p220
        $region106: #{tpu_custom_call.1} parent=99 // pred_check_branch
          %757 = sbr.rel (%p755) target = $region108
        $region107: #{tpu_custom_call.1} parent=99 // pred_region
          %759 = dma.done %s752, 16
        $region108: #{tpu_custom_call.1} parent=99 // pred_fallthru
          _
        %s760 = sand.u32 %s43, 1
        %s761 = scalar_lea.sflag [#allocation6], %s760
        %s762 = sand.u32 %s259, 1
        %s763 = scalar_lea.vmem [#allocation7], %s762
        // Predicated region
        $region109: #{tpu_custom_call.1} parent=99 // pred_check
          %p764 = pneg %p272
        $region110: #{tpu_custom_call.1} parent=99 // pred_check_branch
          %766 = sbr.rel (%p764) target = $region112
        $region111: #{tpu_custom_call.1} parent=99 // pred_region
          %768 = dma.done %s761, 16
        $region112: #{tpu_custom_call.1} parent=99 // pred_fallthru
          _
        // Predicated region
        $region113: #{tpu_custom_call.1} parent=99 // pred_check
          %p769 = pneg %p319
        $region114: #{tpu_custom_call.1} parent=99 // pred_check_branch
          %771 = sbr.rel (%p769) target = $region116
        $region115: #{tpu_custom_call.1} parent=99 // pred_region
          %773 = dma.done [#allocation9], 3072
        $region116: #{tpu_custom_call.1} parent=99 // pred_fallthru
          _
        // Predicated region
        $region117: #{tpu_custom_call.1} parent=99 // pred_check
          %p774 = pneg %p361
        $region118: #{tpu_custom_call.1} parent=99 // pred_check_branch
          %776 = sbr.rel (%p774) target = $region120
        $region119: #{tpu_custom_call.1} parent=99 // pred_region
          %778 = dma.done [#allocation9], 3072
        $region120: #{tpu_custom_call.1} parent=99 // pred_fallthru
          _
        // Predicated region
        $region121: #{tpu_custom_call.1} parent=99 // pred_check
          %p779 = pneg %p403
        $region122: #{tpu_custom_call.1} parent=99 // pred_check_branch
          %781 = sbr.rel (%p779) target = $region124
        $region123: #{tpu_custom_call.1} parent=99 // pred_region
          %783 = dma.done [#allocation12], 3072
        $region124: #{tpu_custom_call.1} parent=99 // pred_fallthru
          _
        // Predicated region
        $region125: #{tpu_custom_call.1} parent=99 // pred_check
          %p784 = pneg %p445
        $region126: #{tpu_custom_call.1} parent=99 // pred_check_branch
          %786 = sbr.rel (%p784) target = $region128
        $region127: #{tpu_custom_call.1} parent=99 // pred_region
          %788 = dma.done [#allocation12], 3072
        $region128: #{tpu_custom_call.1} parent=99 // pred_fallthru
          _
        // Predicated region
        $region129: #{tpu_custom_call.1} parent=99 // pred_check
          %p789 = pneg %p487
        $region130: #{tpu_custom_call.1} parent=99 // pred_check_branch
          %791 = sbr.rel (%p789) target = $region132
        $region131: #{tpu_custom_call.1} parent=99 // pred_region
          %793 = dma.done [#allocation15], 1024
        $region132: #{tpu_custom_call.1} parent=99 // pred_fallthru
          _
        %p794 = scmp.lt.s32.totalorder %s43, 1
        %s795 = scalar_select %p794, %s43, 1
        %s796 = smul.addr %s795, 2
        %s797 = smul.addr %s796, 8
        %s798 = scalar_lea.vmem %s0, %s797
        %p799 = pneg %p64
        %p800 = pneg %p61
        %p801 = scmp.lt.s32.totalorder %s43, 1
        %s802 = scalar_select %p801, %s43, 1
        %s803 = smul.addr %s802, 2
        %s804 = smul.addr %s803, 8
        %s805 = scalar_lea.vmem %s1, %s804
        %p806 = pneg %p90
        %p807 = pneg %p87
        %p808 = scmp.lt.s32.totalorder %s43, 1
        %s809 = scalar_select %p808, %s43, 1
        %s810 = scalar_lea.vmem %s2, %s809
        %p811 = pneg %p116
        %p812 = pneg %p113
        %p813 = scmp.lt.s32.totalorder %s43, 1
        %s814 = scalar_select %p813, %s43, 1
        %s815 = scalar_lea.vmem %s3, %s814
        %p816 = pneg %p142
        %p817 = pneg %p139
        %s818 = sand.u32 %s155, 1
        %s819 = scalar_lea.sflag [#allocation3], %s818
        %s820 = sand.u32 %s155, 1
        %s821 = scalar_lea.vmem [#allocation2], %s820
        %p822 = pneg %p168
        %p823 = pneg %p165
        %p824 = scmp.lt.s32.totalorder %s43, 1
        %s825 = scalar_select %p824, %s43, 1
        %s826 = scalar_lea.vmem %s5, %s825
        %p827 = pneg %p194
        %p828 = pneg %p191
        %s829 = sand.u32 %s43, 1
        %s830 = scalar_lea.sflag [#allocation6], %s829
        %s831 = sand.u32 %s207, 1
        %s832 = scalar_lea.vmem [#allocation5], %s831
        %p833 = pneg %p220
        %p834 = pneg %p217
        %p835 = scmp.lt.s32.totalorder %s43, 1
        %s836 = scalar_select %p835, %s43, 1
        %s837 = scalar_lea.vmem %s7, %s836
        %p838 = pneg %p246
        %p839 = pneg %p243
        %s840 = sand.u32 %s43, 1
        %s841 = scalar_lea.sflag [#allocation6], %s840
        %s842 = sand.u32 %s259, 1
        %s843 = scalar_lea.vmem [#allocation7], %s842
        %p844 = pneg %p272
        %p845 = pneg %p269
        %p846 = scmp.lt.s32.totalorder %s43, 1
        %s847 = scalar_select %p846, %s43, 1
        %s848 = scalar_lea.vmem %s9, %s847
        %p849 = pneg %p298
        %p850 = pneg %p295
        %p851 = pneg %p319
        %p852 = pneg %p316
        %p853 = pneg %p340
        %p854 = pneg %p337
        %p855 = pneg %p361
        %p856 = pneg %p358
        %p857 = pneg %p382
        %p858 = pneg %p379
        %p859 = pneg %p403
        %p860 = pneg %p400
        %p861 = pneg %p424
        %p862 = pneg %p421
        %p863 = pneg %p445
        %p864 = pneg %p442
        %p865 = pneg %p466
        %p866 = pneg %p463
        %p867 = pneg %p487
        %p868 = pneg %p484
        %p869 = pneg %p508
        %p870 = pneg %p505
        %p871 = pneg %p534
        %p872 = pneg %p531
        %s873 = sand.u32 %s521, 1
        %s874 = scalar_lea.sflag [#allocation4], %s873
        %s875 = sand.u32 %s521, 1
        %s876 = smul.addr %s875, 16
        %s877 = scalar_lea.vmem [#allocation16], %s876
        %p878 = scmp.lt.s32.totalorder %s43, 1
        %s879 = scalar_select %p878, %s43, 1
        %s880 = smul.addr %s879, 2
        %s881 = smul.addr %s880, 8
        %s882 = scalar_lea.vmem %s0, %s881
        %p883 = scmp.lt.s32.totalorder %s43, 1
        %s884 = scalar_select %p883, %s43, 1
        %s885 = smul.addr %s884, 2
        %s886 = smul.addr %s885, 8
        %s887 = scalar_lea.vmem %s1, %s886
        %p888 = scmp.lt.s32.totalorder %s43, 1
        %s889 = scalar_select %p888, %s43, 1
        %s890 = scalar_lea.vmem %s2, %s889
        %p891 = scmp.lt.s32.totalorder %s43, 1
        %s892 = scalar_select %p891, %s43, 1
        %s893 = scalar_lea.vmem %s3, %s892
        %p894 = scmp.lt.s32.totalorder %s43, 1
        %s895 = scalar_select %p894, %s43, 1
        %s896 = scalar_lea.vmem %s5, %s895
        %p897 = scmp.lt.s32.totalorder %s43, 1
        %s898 = scalar_select %p897, %s43, 1
        %s899 = scalar_lea.vmem %s7, %s898
        %p900 = scmp.lt.s32.totalorder %s43, 1
        %s901 = scalar_select %p900, %s43, 1
        %s902 = scalar_lea.vmem %s9, %s901
        %v903 = vld [vmem:[%s882] sm:$0xff]
        %v904 = vld [vmem:[%s882 + $0x8] sm:$0xff]
        %v905 = vld [vmem:[%s887] sm:$0xff]
        %v906 = vld [vmem:[%s887 + $0x8] sm:$0xff]
        %v907 = vld [vmem:[%s890] sm:$0x1]
        %v909 = vperm.slane %v907, 0
        %v911 = vmul.f32 %v903, %v909
        %v912 = vmul.f32 %v904, %v909
        %v913 = vld [vmem:[%s893] sm:$0x1]
        %v915 = vperm.slane %v913, 0
        %v917 = vadd.f32 %v911, %v915
        %v918 = vadd.f32 %v912, %v915
        %vm919 = vcmp.gt.f32.partialorder %v917, 0.0
        %vm920 = vcmp.gt.f32.partialorder %v918, 0.0
        %v921 = vmul.f32 %v917, 0.2
        %v922 = vmul.f32 %v918, 0.2
        %v923 = vsel %vm919, %v917, %v921
        %v924 = vsel %vm920, %v918, %v922
        %vm927 = vcmask 1046528
        %v928 = vrot.slane %v923, 1
        %v929 = vrot.slane %v924, 1
        %v930 = vsel %vm927, %v928, %v929
        %vm935 = vcmask 1045504
        %v936 = vrot.slane %v923, 2
        %v937 = vrot.slane %v924, 2
        %v938 = vsel %vm935, %v936, %v937
        %v939 = vrot.slane 0.0, 2
        %v940 = vsel %vm935, %v937, %v939
        %v944 = vpack.c.bf16 %v923, 0.0
        %v945 = vpack.c.bf16 %v930, %v928
        %v946 = vpack.c.bf16 %v938, %v936
        %v947 = vpack.c.bf16 %v924, %v924
        %v948 = vpack.c.bf16 %v929, %v929
        %v949 = vpack.c.bf16 %v940, %v940
        %v950 = vld [vmem:[#allocation8] sm:$0xf]
        %v951 = vld [vmem:[#allocation8 + $0x4] sm:$0xf]
        %v952 = vld [vmem:[#allocation8 + $0x8] sm:$0xf]
        %v953 = vld [vmem:[#allocation8 + $0xc] sm:$0xf]
        %v954 = vld [vmem:[#allocation8 + $0x10] sm:$0xf]
        %v955 = vld [vmem:[#allocation8 + $0x14] sm:$0xf]
        %v956 = vld [vmem:[#allocation8 + $0x18] sm:$0xf]
        %v957 = vld [vmem:[#allocation8 + $0x1c] sm:$0xf]
        %v958 = vld [vmem:[#allocation8 + $0x20] sm:$0xf]
        %v959 = vld [vmem:[#allocation8 + $0x24] sm:$0xf]
        %v960 = vld [vmem:[#allocation8 + $0x28] sm:$0xf]
        %v961 = vld [vmem:[#allocation8 + $0x2c] sm:$0xf]
        %v962 = vld [vmem:[#allocation8 + $0x30] sm:$0xf]
        %v963 = vld [vmem:[#allocation8 + $0x34] sm:$0xf]
        %v964 = vld [vmem:[#allocation8 + $0x38] sm:$0xf]
        %v965 = vld [vmem:[#allocation8 + $0x3c] sm:$0xf]
        %v966 = vld [vmem:[#allocation8 + $0x40] sm:$0xf]
        %v967 = vld [vmem:[#allocation8 + $0x44] sm:$0xf]
        %v968 = vld [vmem:[#allocation8 + $0x48] sm:$0xf]
        %v969 = vld [vmem:[#allocation8 + $0x4c] sm:$0xf]
        %v970 = vld [vmem:[#allocation8 + $0x50] sm:$0xf]
        %v971 = vld [vmem:[#allocation8 + $0x54] sm:$0xf]
        %v972 = vld [vmem:[#allocation8 + $0x58] sm:$0xf]
        %v973 = vld [vmem:[#allocation8 + $0x5c] sm:$0xf]
        %v974 = vld [vmem:[#allocation8 + $0x60] sm:$0xf]
        %v975 = vld [vmem:[#allocation8 + $0x64] sm:$0xf]
        %v976 = vld [vmem:[#allocation8 + $0x68] sm:$0xf]
        %v977 = vld [vmem:[#allocation8 + $0x6c] sm:$0xf]
        %v978 = vld [vmem:[#allocation8 + $0x70] sm:$0xf]
        %v979 = vld [vmem:[#allocation8 + $0x74] sm:$0xf]
        %v980 = vld [vmem:[#allocation8 + $0x78] sm:$0xf]
        %v981 = vld [vmem:[#allocation8 + $0x7c] sm:$0xf]
        %v982 = vld [vmem:[#allocation8 + $0x80] sm:$0xf]
        %v983 = vld [vmem:[#allocation8 + $0x84] sm:$0xf]
        %v984 = vld [vmem:[#allocation8 + $0x88] sm:$0xf]
        %v985 = vld [vmem:[#allocation8 + $0x8c] sm:$0xf]
        %v986 = vld [vmem:[#allocation8 + $0x90] sm:$0xf]
        %v987 = vld [vmem:[#allocation8 + $0x94] sm:$0xf]
        %v988 = vld [vmem:[#allocation8 + $0x98] sm:$0xf]
        %v989 = vld [vmem:[#allocation8 + $0x9c] sm:$0xf]
        %v990 = vld [vmem:[#allocation8 + $0xa0] sm:$0xf]
        %v991 = vld [vmem:[#allocation8 + $0xa4] sm:$0xf]
        %v992 = vld [vmem:[#allocation8 + $0xa8] sm:$0xf]
        %v993 = vld [vmem:[#allocation8 + $0xac] sm:$0xf]
        %v994 = vld [vmem:[#allocation8 + $0xb0] sm:$0xf]
        %v995 = vld [vmem:[#allocation8 + $0xb4] sm:$0xf]
        %v996 = vld [vmem:[#allocation8 + $0xb8] sm:$0xf]
        %v997 = vld [vmem:[#allocation8 + $0xbc] sm:$0xf]
        %v998 = vld [vmem:[%s11] sm:$0x1]
        %v1000 = vperm.slane %v998, 0
        %vm1002 = vsmask.f32 4352
        %v1004 = vshrl.u32 %v944, 16
        %v1006 = vrot.slane %v1004, 3
        %v1007 = vshll.u32 %v944, 16
        %v1009 = vrot.slane %v1007, 4
        %v1010 = vor.u32 %v1006, %v1009
        %v1012 = vshrl.u32 %v947, 16
        %v1014 = vrot.slane %v1012, 3
        %v1015 = vshll.u32 %v947, 16
        %v1017 = vrot.slane %v1015, 4
        %v1018 = vor.u32 %v1014, %v1017
        %v1019 = vsel %vm1002, %v1010, %v1018
        %v1021 = vshrl.u32 %v945, 16
        %v1023 = vrot.slane %v1021, 3
        %v1024 = vshll.u32 %v945, 16
        %v1026 = vrot.slane %v1024, 4
        %v1027 = vor.u32 %v1023, %v1026
        %v1029 = vshrl.u32 %v948, 16
        %v1031 = vrot.slane %v1029, 3
        %v1032 = vshll.u32 %v948, 16
        %v1034 = vrot.slane %v1032, 4
        %v1035 = vor.u32 %v1031, %v1034
        %v1036 = vsel %vm1002, %v1027, %v1035
        %v1038 = vshrl.u32 %v946, 16
        %v1040 = vrot.slane %v1038, 3
        %v1041 = vshll.u32 %v946, 16
        %v1043 = vrot.slane %v1041, 4
        %v1044 = vor.u32 %v1040, %v1043
        %v1046 = vshrl.u32 %v949, 16
        %v1048 = vrot.slane %v1046, 3
        %v1049 = vshll.u32 %v949, 16
        %v1051 = vrot.slane %v1049, 4
        %v1052 = vor.u32 %v1048, %v1051
        %v1053 = vsel %vm1002, %v1044, %v1052
        %v1105 = vunpack.c.l.b16 %v950
        %v1106 = vunpack.c.l.b16 %v951
        %v1107 = vunpack.c.l.b16 %v952
        %v1108 = vunpack.c.l.b16 %v953
        %v1109 = vunpack.c.l.b16 %v954
        %v1110 = vunpack.c.l.b16 %v955
        %v1111 = vunpack.c.l.b16 %v956
        %v1112 = vunpack.c.l.b16 %v957
        %v1113 = vunpack.c.l.b16 %v958
        %v1114 = vunpack.c.l.b16 %v959
        %v1115 = vunpack.c.l.b16 %v960
        %v1116 = vunpack.c.l.b16 %v961
        %v1117 = vunpack.c.l.b16 %v962
        %v1118 = vunpack.c.l.b16 %v963
        %v1119 = vunpack.c.l.b16 %v964
        %v1120 = vunpack.c.l.b16 %v965
        %v1121 = vunpack.c.l.b16 %v966
        %v1122 = vunpack.c.l.b16 %v967
        %v1123 = vunpack.c.l.b16 %v968
        %v1124 = vunpack.c.l.b16 %v969
        %v1125 = vunpack.c.l.b16 %v970
        %v1126 = vunpack.c.l.b16 %v971
        %v1127 = vunpack.c.l.b16 %v972
        %v1128 = vunpack.c.l.b16 %v973
        %v1129 = vunpack.c.l.b16 %v974
        %v1130 = vunpack.c.l.b16 %v975
        %v1131 = vunpack.c.l.b16 %v976
        %v1132 = vunpack.c.l.b16 %v977
        %v1133 = vunpack.c.l.b16 %v978
        %v1134 = vunpack.c.l.b16 %v979
        %v1135 = vunpack.c.l.b16 %v980
        %v1136 = vunpack.c.l.b16 %v981
        %v1137 = vunpack.c.l.b16 %v982
        %v1138 = vunpack.c.l.b16 %v983
        %v1139 = vunpack.c.l.b16 %v984
        %v1140 = vunpack.c.l.b16 %v985
        %v1141 = vunpack.c.l.b16 %v986
        %v1142 = vunpack.c.l.b16 %v987
        %v1143 = vunpack.c.l.b16 %v988
        %v1144 = vunpack.c.l.b16 %v989
        %v1145 = vunpack.c.l.b16 %v990
        %v1146 = vunpack.c.l.b16 %v991
        %v1147 = vunpack.c.l.b16 %v992
        %v1148 = vunpack.c.l.b16 %v993
        %v1149 = vunpack.c.l.b16 %v994
        %v1150 = vunpack.c.l.b16 %v995
        %v1151 = vunpack.c.l.b16 %v996
        %v1152 = vunpack.c.l.b16 %v997
        %v1153 = vpack.c.b16 %v1106, %v1105
        %v1154 = vpack.c.b16 %v1108, %v1107
        %v1155 = vpack.c.b16 %v1110, %v1109
        %v1156 = vpack.c.b16 %v1112, %v1111
        %v1157 = vpack.c.b16 %v1114, %v1113
        %v1158 = vpack.c.b16 %v1116, %v1115
        %v1159 = vpack.c.b16 %v1118, %v1117
        %v1160 = vpack.c.b16 %v1120, %v1119
        %v1161 = vpack.c.b16 %v1122, %v1121
        %v1162 = vpack.c.b16 %v1124, %v1123
        %v1163 = vpack.c.b16 %v1126, %v1125
        %v1164 = vpack.c.b16 %v1128, %v1127
        %v1165 = vpack.c.b16 %v1130, %v1129
        %v1166 = vpack.c.b16 %v1132, %v1131
        %v1167 = vpack.c.b16 %v1134, %v1133
        %v1168 = vpack.c.b16 %v1136, %v1135
        %v1169 = vpack.c.b16 %v1138, %v1137
        %v1170 = vpack.c.b16 %v1140, %v1139
        %v1171 = vpack.c.b16 %v1142, %v1141
        %v1172 = vpack.c.b16 %v1144, %v1143
        %v1173 = vpack.c.b16 %v1146, %v1145
        %v1174 = vpack.c.b16 %v1148, %v1147
        %v1175 = vpack.c.b16 %v1150, %v1149
        %v1176 = vpack.c.b16 %v1152, %v1151
        %1201 = vmatpush.bf16.msra.mxu0 %v1160
        %1202 = vmatpush.bf16.msra.mxu0 %v1159
        %1203 = vmatpush.bf16.msra.mxu0 %v1158
        %1204 = vmatpush.bf16.msra.mxu0 %v1157
        %1205 = vmatpush.bf16.msra.mxu0 %v1156
        %1206 = vmatpush.bf16.msra.mxu0 %v1155
        %1207 = vmatpush.bf16.msra.mxu0 %v1154
        %1208 = vmatpush.bf16.msra.mxu0 %v1153
        %1209 = vmatmul.bf16.gmra.mxu0 %v1019
        %v1210 = vpop.f32.mrf.mxu0
        %v1211 = vadd.f32 %v1000, %v1210
        %v1212 = vpop.f32.mrf.mxu0
        %v1213 = vadd.f32 %v1000, %v1212
        %1214 = vdwg.mxu0
        %1215 = vmatpush.bf16.msra.mxu0 %v1168
        %1216 = vmatpush.bf16.msra.mxu0 %v1167
        %1217 = vmatpush.bf16.msra.mxu0 %v1166
        %1218 = vmatpush.bf16.msra.mxu0 %v1165
        %1219 = vmatpush.bf16.msra.mxu0 %v1164
        %1220 = vmatpush.bf16.msra.mxu0 %v1163
        %1221 = vmatpush.bf16.msra.mxu0 %v1162
        %1222 = vmatpush.bf16.msra.mxu0 %v1161
        %1223 = vmatmul.bf16.gmra.mxu0 %v1036
        %v1224 = vpop.f32.mrf.mxu0
        %v1225 = vadd.f32 %v1211, %v1224
        %v1226 = vpop.f32.mrf.mxu0
        %v1227 = vadd.f32 %v1213, %v1226
        %1228 = vdwg.mxu0
        %1229 = vmatpush.bf16.msra.mxu0 %v1176
        %1230 = vmatpush.bf16.msra.mxu0 %v1175
        %1231 = vmatpush.bf16.msra.mxu0 %v1174
        %1232 = vmatpush.bf16.msra.mxu0 %v1173
        %1233 = vmatpush.bf16.msra.mxu0 %v1172
        %1234 = vmatpush.bf16.msra.mxu0 %v1171
        %1235 = vmatpush.bf16.msra.mxu0 %v1170
        %1236 = vmatpush.bf16.msra.mxu0 %v1169
        %1237 = vmatmul.bf16.gmra.mxu0 %v1053
        %v1238 = vpop.f32.mrf.mxu0
        %v1239 = vadd.f32 %v1225, %v1238
        %v1240 = vpop.f32.mrf.mxu0
        %v1241 = vadd.f32 %v1227, %v1240
        %1242 = vdwg.mxu0
        %1244 = vset.pattern.permute.xlu0 0
        %1245 = vperm.xlu0 %1244, %v905
        %v1246 = vpop.permute.xlu0 %1245
        %1249 = vset.pattern.permute.xlu0 0
        %1250 = vperm.xlu0 %1249, %v906
        %v1251 = vpop.permute.xlu0 %1250
        %v1253 = vmul.f32 %v1239, %v1246
        %v1254 = vmul.f32 %v1241, %v1251
        %v1255 = vld [vmem:[%s745] sm:$0x1]
        %v1257 = vperm.slane %v1255, 0
        %v1259 = vmul.f32 %v1253, %v1257
        %v1260 = vmul.f32 %v1254, %v1257
        %v1261 = vld [vmem:[%s896] sm:$0x1]
        %v1263 = vperm.slane %v1261, 0
        %v1265 = vadd.f32 %v1259, %v1263
        %v1266 = vadd.f32 %v1260, %v1263
        %vm1267 = vcmp.gt.f32.partialorder %v1265, 0.0
        %vm1268 = vcmp.gt.f32.partialorder %v1266, 0.0
        %v1269 = vmul.f32 %v1265, 0.2
        %v1270 = vmul.f32 %v1266, 0.2
        %v1271 = vsel %vm1267, %v1265, %v1269
        %v1272 = vsel %vm1268, %v1266, %v1270
        %v1275 = vrot.slane %v1271, 2
        %v1276 = vrot.slane %v1272, 2
        %v1277 = vsel %vm935, %v1275, %v1276
        %vm1281 = vcmask 1043456
        %v1282 = vrot.slane %v1271, 4
        %v1283 = vrot.slane %v1272, 4
        %v1284 = vsel %vm1281, %v1282, %v1283
        %v1285 = vrot.slane 0.0, 4
        %v1286 = vsel %vm1281, %v1283, %v1285
        %v1290 = vpack.c.bf16 %v1271, 0.0
        %v1291 = vpack.c.bf16 %v1277, %v1275
        %v1292 = vpack.c.bf16 %v1284, %v1282
        %v1293 = vpack.c.bf16 %v1272, %v1272
        %v1294 = vpack.c.bf16 %v1276, %v1276
        %v1295 = vpack.c.bf16 %v1286, %v1286
        %v1296 = vld [vmem:[#allocation10] sm:$0xf]
        %v1297 = vld [vmem:[#allocation10 + $0x4] sm:$0xf]
        %v1298 = vld [vmem:[#allocation10 + $0x8] sm:$0xf]
        %v1299 = vld [vmem:[#allocation10 + $0xc] sm:$0xf]
        %v1300 = vld [vmem:[#allocation10 + $0x10] sm:$0xf]
        %v1301 = vld [vmem:[#allocation10 + $0x14] sm:$0xf]
        %v1302 = vld [vmem:[#allocation10 + $0x18] sm:$0xf]
        %v1303 = vld [vmem:[#allocation10 + $0x1c] sm:$0xf]
        %v1304 = vld [vmem:[#allocation10 + $0x20] sm:$0xf]
        %v1305 = vld [vmem:[#allocation10 + $0x24] sm:$0xf]
        %v1306 = vld [vmem:[#allocation10 + $0x28] sm:$0xf]
        %v1307 = vld [vmem:[#allocation10 + $0x2c] sm:$0xf]
        %v1308 = vld [vmem:[#allocation10 + $0x30] sm:$0xf]
        %v1309 = vld [vmem:[#allocation10 + $0x34] sm:$0xf]
        %v1310 = vld [vmem:[#allocation10 + $0x38] sm:$0xf]
        %v1311 = vld [vmem:[#allocation10 + $0x3c] sm:$0xf]
        %v1312 = vld [vmem:[#allocation10 + $0x40] sm:$0xf]
        %v1313 = vld [vmem:[#allocation10 + $0x44] sm:$0xf]
        %v1314 = vld [vmem:[#allocation10 + $0x48] sm:$0xf]
        %v1315 = vld [vmem:[#allocation10 + $0x4c] sm:$0xf]
        %v1316 = vld [vmem:[#allocation10 + $0x50] sm:$0xf]
        %v1317 = vld [vmem:[#allocation10 + $0x54] sm:$0xf]
        %v1318 = vld [vmem:[#allocation10 + $0x58] sm:$0xf]
        %v1319 = vld [vmem:[#allocation10 + $0x5c] sm:$0xf]
        %v1320 = vld [vmem:[#allocation10 + $0x60] sm:$0xf]
        %v1321 = vld [vmem:[#allocation10 + $0x64] sm:$0xf]
        %v1322 = vld [vmem:[#allocation10 + $0x68] sm:$0xf]
        %v1323 = vld [vmem:[#allocation10 + $0x6c] sm:$0xf]
        %v1324 = vld [vmem:[#allocation10 + $0x70] sm:$0xf]
        %v1325 = vld [vmem:[#allocation10 + $0x74] sm:$0xf]
        %v1326 = vld [vmem:[#allocation10 + $0x78] sm:$0xf]
        %v1327 = vld [vmem:[#allocation10 + $0x7c] sm:$0xf]
        %v1328 = vld [vmem:[#allocation10 + $0x80] sm:$0xf]
        %v1329 = vld [vmem:[#allocation10 + $0x84] sm:$0xf]
        %v1330 = vld [vmem:[#allocation10 + $0x88] sm:$0xf]
        %v1331 = vld [vmem:[#allocation10 + $0x8c] sm:$0xf]
        %v1332 = vld [vmem:[#allocation10 + $0x90] sm:$0xf]
        %v1333 = vld [vmem:[#allocation10 + $0x94] sm:$0xf]
        %v1334 = vld [vmem:[#allocation10 + $0x98] sm:$0xf]
        %v1335 = vld [vmem:[#allocation10 + $0x9c] sm:$0xf]
        %v1336 = vld [vmem:[#allocation10 + $0xa0] sm:$0xf]
        %v1337 = vld [vmem:[#allocation10 + $0xa4] sm:$0xf]
        %v1338 = vld [vmem:[#allocation10 + $0xa8] sm:$0xf]
        %v1339 = vld [vmem:[#allocation10 + $0xac] sm:$0xf]
        %v1340 = vld [vmem:[#allocation10 + $0xb0] sm:$0xf]
        %v1341 = vld [vmem:[#allocation10 + $0xb4] sm:$0xf]
        %v1342 = vld [vmem:[#allocation10 + $0xb8] sm:$0xf]
        %v1343 = vld [vmem:[#allocation10 + $0xbc] sm:$0xf]
        %v1344 = vld [vmem:[%s13] sm:$0x1]
        %v1346 = vperm.slane %v1344, 0
        %vm1354 = vcmask 1044480
        %v1355 = vrot.slane %v1290, 3
        %v1356 = vrot.slane %v1293, 3
        %v1357 = vsel %vm1354, %v1355, %v1356
        %v1358 = vrot.slane %v1291, 3
        %v1359 = vrot.slane %v1294, 3
        %v1360 = vsel %vm1354, %v1358, %v1359
        %v1361 = vrot.slane %v1292, 3
        %v1362 = vrot.slane %v1295, 3
        %v1363 = vsel %vm1354, %v1361, %v1362
        %v1415 = vunpack.c.l.b16 %v1296
        %v1416 = vunpack.c.l.b16 %v1297
        %v1417 = vunpack.c.l.b16 %v1298
        %v1418 = vunpack.c.l.b16 %v1299
        %v1419 = vunpack.c.l.b16 %v1300
        %v1420 = vunpack.c.l.b16 %v1301
        %v1421 = vunpack.c.l.b16 %v1302
        %v1422 = vunpack.c.l.b16 %v1303
        %v1423 = vunpack.c.l.b16 %v1304
        %v1424 = vunpack.c.l.b16 %v1305
        %v1425 = vunpack.c.l.b16 %v1306
        %v1426 = vunpack.c.l.b16 %v1307
        %v1427 = vunpack.c.l.b16 %v1308
        %v1428 = vunpack.c.l.b16 %v1309
        %v1429 = vunpack.c.l.b16 %v1310
        %v1430 = vunpack.c.l.b16 %v1311
        %v1431 = vunpack.c.l.b16 %v1312
        %v1432 = vunpack.c.l.b16 %v1313
        %v1433 = vunpack.c.l.b16 %v1314
        %v1434 = vunpack.c.l.b16 %v1315
        %v1435 = vunpack.c.l.b16 %v1316
        %v1436 = vunpack.c.l.b16 %v1317
        %v1437 = vunpack.c.l.b16 %v1318
        %v1438 = vunpack.c.l.b16 %v1319
        %v1439 = vunpack.c.l.b16 %v1320
        %v1440 = vunpack.c.l.b16 %v1321
        %v1441 = vunpack.c.l.b16 %v1322
        %v1442 = vunpack.c.l.b16 %v1323
        %v1443 = vunpack.c.l.b16 %v1324
        %v1444 = vunpack.c.l.b16 %v1325
        %v1445 = vunpack.c.l.b16 %v1326
        %v1446 = vunpack.c.l.b16 %v1327
        %v1447 = vunpack.c.l.b16 %v1328
        %v1448 = vunpack.c.l.b16 %v1329
        %v1449 = vunpack.c.l.b16 %v1330
        %v1450 = vunpack.c.l.b16 %v1331
        %v1451 = vunpack.c.l.b16 %v1332
        %v1452 = vunpack.c.l.b16 %v1333
        %v1453 = vunpack.c.l.b16 %v1334
        %v1454 = vunpack.c.l.b16 %v1335
        %v1455 = vunpack.c.l.b16 %v1336
        %v1456 = vunpack.c.l.b16 %v1337
        %v1457 = vunpack.c.l.b16 %v1338
        %v1458 = vunpack.c.l.b16 %v1339
        %v1459 = vunpack.c.l.b16 %v1340
        %v1460 = vunpack.c.l.b16 %v1341
        %v1461 = vunpack.c.l.b16 %v1342
        %v1462 = vunpack.c.l.b16 %v1343
        %v1463 = vpack.c.b16 %v1416, %v1415
        %v1464 = vpack.c.b16 %v1418, %v1417
        %v1465 = vpack.c.b16 %v1420, %v1419
        %v1466 = vpack.c.b16 %v1422, %v1421
        %v1467 = vpack.c.b16 %v1424, %v1423
        %v1468 = vpack.c.b16 %v1426, %v1425
        %v1469 = vpack.c.b16 %v1428, %v1427
        %v1470 = vpack.c.b16 %v1430, %v1429
        %v1471 = vpack.c.b16 %v1432, %v1431
        %v1472 = vpack.c.b16 %v1434, %v1433
        %v1473 = vpack.c.b16 %v1436, %v1435
        %v1474 = vpack.c.b16 %v1438, %v1437
        %v1475 = vpack.c.b16 %v1440, %v1439
        %v1476 = vpack.c.b16 %v1442, %v1441
        %v1477 = vpack.c.b16 %v1444, %v1443
        %v1478 = vpack.c.b16 %v1446, %v1445
        %v1479 = vpack.c.b16 %v1448, %v1447
        %v1480 = vpack.c.b16 %v1450, %v1449
        %v1481 = vpack.c.b16 %v1452, %v1451
        %v1482 = vpack.c.b16 %v1454, %v1453
        %v1483 = vpack.c.b16 %v1456, %v1455
        %v1484 = vpack.c.b16 %v1458, %v1457
        %v1485 = vpack.c.b16 %v1460, %v1459
        %v1486 = vpack.c.b16 %v1462, %v1461
        %1511 = vmatpush.bf16.msra.mxu0 %v1470
        %1512 = vmatpush.bf16.msra.mxu0 %v1469
        %1513 = vmatpush.bf16.msra.mxu0 %v1468
        %1514 = vmatpush.bf16.msra.mxu0 %v1467
        %1515 = vmatpush.bf16.msra.mxu0 %v1466
        %1516 = vmatpush.bf16.msra.mxu0 %v1465
        %1517 = vmatpush.bf16.msra.mxu0 %v1464
        %1518 = vmatpush.bf16.msra.mxu0 %v1463
        %1519 = vmatmul.bf16.gmra.mxu0 %v1357
        %v1520 = vpop.f32.mrf.mxu0
        %v1521 = vadd.f32 %v1346, %v1520
        %v1522 = vpop.f32.mrf.mxu0
        %v1523 = vadd.f32 %v1346, %v1522
        %1524 = vdwg.mxu0
        %1525 = vmatpush.bf16.msra.mxu0 %v1478
        %1526 = vmatpush.bf16.msra.mxu0 %v1477
        %1527 = vmatpush.bf16.msra.mxu0 %v1476
        %1528 = vmatpush.bf16.msra.mxu0 %v1475
        %1529 = vmatpush.bf16.msra.mxu0 %v1474
        %1530 = vmatpush.bf16.msra.mxu0 %v1473
        %1531 = vmatpush.bf16.msra.mxu0 %v1472
        %1532 = vmatpush.bf16.msra.mxu0 %v1471
        %1533 = vmatmul.bf16.gmra.mxu0 %v1360
        %v1534 = vpop.f32.mrf.mxu0
        %v1535 = vadd.f32 %v1521, %v1534
        %v1536 = vpop.f32.mrf.mxu0
        %v1537 = vadd.f32 %v1523, %v1536
        %1538 = vdwg.mxu0
        %1539 = vmatpush.bf16.msra.mxu0 %v1486
        %1540 = vmatpush.bf16.msra.mxu0 %v1485
        %1541 = vmatpush.bf16.msra.mxu0 %v1484
        %1542 = vmatpush.bf16.msra.mxu0 %v1483
        %1543 = vmatpush.bf16.msra.mxu0 %v1482
        %1544 = vmatpush.bf16.msra.mxu0 %v1481
        %1545 = vmatpush.bf16.msra.mxu0 %v1480
        %1546 = vmatpush.bf16.msra.mxu0 %v1479
        %1547 = vmatmul.bf16.gmra.mxu0 %v1363
        %v1548 = vpop.f32.mrf.mxu0
        %v1549 = vadd.f32 %v1535, %v1548
        %v1550 = vpop.f32.mrf.mxu0
        %v1551 = vadd.f32 %v1537, %v1550
        %1552 = vdwg.mxu0
        %v1553 = vmul.f32 %v1549, %v1246
        %v1554 = vmul.f32 %v1551, %v1251
        %v1555 = vpack.c.bf16 %v904, %v903
        %v1556 = vld [vmem:[#allocation14] sm:$0xf]
        %v1557 = vld [vmem:[#allocation14 + $0x4] sm:$0xf]
        %v1558 = vld [vmem:[#allocation14 + $0x8] sm:$0xf]
        %v1559 = vld [vmem:[#allocation14 + $0xc] sm:$0xf]
        %v1560 = vld [vmem:[#allocation14 + $0x10] sm:$0xf]
        %v1561 = vld [vmem:[#allocation14 + $0x14] sm:$0xf]
        %v1562 = vld [vmem:[#allocation14 + $0x18] sm:$0xf]
        %v1563 = vld [vmem:[#allocation14 + $0x1c] sm:$0xf]
        %v1564 = vld [vmem:[#allocation14 + $0x20] sm:$0xf]
        %v1565 = vld [vmem:[#allocation14 + $0x24] sm:$0xf]
        %v1566 = vld [vmem:[#allocation14 + $0x28] sm:$0xf]
        %v1567 = vld [vmem:[#allocation14 + $0x2c] sm:$0xf]
        %v1568 = vld [vmem:[#allocation14 + $0x30] sm:$0xf]
        %v1569 = vld [vmem:[#allocation14 + $0x34] sm:$0xf]
        %v1570 = vld [vmem:[#allocation14 + $0x38] sm:$0xf]
        %v1571 = vld [vmem:[#allocation14 + $0x3c] sm:$0xf]
        %v1572 = vld [vmem:[%s19] sm:$0x1]
        %v1574 = vperm.slane %v1572, 0
        %v1592 = vunpack.c.l.b16 %v1556
        %v1593 = vunpack.c.l.b16 %v1557
        %v1594 = vunpack.c.l.b16 %v1558
        %v1595 = vunpack.c.l.b16 %v1559
        %v1596 = vunpack.c.l.b16 %v1560
        %v1597 = vunpack.c.l.b16 %v1561
        %v1598 = vunpack.c.l.b16 %v1562
        %v1599 = vunpack.c.l.b16 %v1563
        %v1600 = vunpack.c.l.b16 %v1564
        %v1601 = vunpack.c.l.b16 %v1565
        %v1602 = vunpack.c.l.b16 %v1566
        %v1603 = vunpack.c.l.b16 %v1567
        %v1604 = vunpack.c.l.b16 %v1568
        %v1605 = vunpack.c.l.b16 %v1569
        %v1606 = vunpack.c.l.b16 %v1570
        %v1607 = vunpack.c.l.b16 %v1571
        %v1608 = vpack.c.b16 %v1593, %v1592
        %v1609 = vpack.c.b16 %v1595, %v1594
        %v1610 = vpack.c.b16 %v1597, %v1596
        %v1611 = vpack.c.b16 %v1599, %v1598
        %v1612 = vpack.c.b16 %v1601, %v1600
        %v1613 = vpack.c.b16 %v1603, %v1602
        %v1614 = vpack.c.b16 %v1605, %v1604
        %v1615 = vpack.c.b16 %v1607, %v1606
        %1624 = vmatpush.bf16.msra.mxu0 %v1615
        %1625 = vmatpush.bf16.msra.mxu0 %v1614
        %1626 = vmatpush.bf16.msra.mxu0 %v1613
        %1627 = vmatpush.bf16.msra.mxu0 %v1612
        %1628 = vmatpush.bf16.msra.mxu0 %v1611
        %1629 = vmatpush.bf16.msra.mxu0 %v1610
        %1630 = vmatpush.bf16.msra.mxu0 %v1609
        %1631 = vmatpush.bf16.msra.mxu0 %v1608
        %1632 = vmatmul.bf16.gmra.mxu0 %v1555
        %v1633 = vpop.f32.mrf.mxu0
        %v1634 = vadd.f32 %v1574, %v1633
        %v1635 = vpop.f32.mrf.mxu0
        %v1636 = vadd.f32 %v1574, %v1635
        %1637 = vdwg.mxu0
        %v1638 = vadd.f32 %v1553, %v1634
        %v1639 = vadd.f32 %v1554, %v1636
        %v1640 = vmul.f32 %v1638, %v1246
        %v1641 = vmul.f32 %v1639, %v1251
        %v1642 = vld [vmem:[%s754] sm:$0x1]
        %v1644 = vperm.slane %v1642, 0
        %v1646 = vmul.f32 %v1640, %v1644
        %v1647 = vmul.f32 %v1641, %v1644
        %v1648 = vld [vmem:[%s899] sm:$0x1]
        %v1650 = vperm.slane %v1648, 0
        %v1652 = vadd.f32 %v1646, %v1650
        %v1653 = vadd.f32 %v1647, %v1650
        %vm1654 = vcmp.gt.f32.partialorder %v1652, 0.0
        %vm1655 = vcmp.gt.f32.partialorder %v1653, 0.0
        %v1656 = vmul.f32 %v1652, 0.2
        %v1657 = vmul.f32 %v1653, 0.2
        %v1658 = vsel %vm1654, %v1652, %v1656
        %v1659 = vsel %vm1655, %v1653, %v1657
        %v1662 = vrot.slane %v1658, 4
        %v1663 = vrot.slane %v1659, 4
        %v1664 = vsel %vm1281, %v1662, %v1663
        %v1668 = vpack.c.bf16 %v1658, 0.0
        %v1669 = vpack.c.bf16 %v1664, %v1662
        %v1670 = vpack.c.bf16 %v1659, %v1658
        %v1671 = vpack.c.bf16 %v1659, %v1659
        %v1672 = vpack.c.bf16 %v1663, %v1663
        %v1673 = vpack.c.bf16 0.0, 0.0
        %v1674 = vld [vmem:[#allocation11] sm:$0xf]
        %v1675 = vld [vmem:[#allocation11 + $0x4] sm:$0xf]
        %v1676 = vld [vmem:[#allocation11 + $0x8] sm:$0xf]
        %v1677 = vld [vmem:[#allocation11 + $0xc] sm:$0xf]
        %v1678 = vld [vmem:[#allocation11 + $0x10] sm:$0xf]
        %v1679 = vld [vmem:[#allocation11 + $0x14] sm:$0xf]
        %v1680 = vld [vmem:[#allocation11 + $0x18] sm:$0xf]
        %v1681 = vld [vmem:[#allocation11 + $0x1c] sm:$0xf]
        %v1682 = vld [vmem:[#allocation11 + $0x20] sm:$0xf]
        %v1683 = vld [vmem:[#allocation11 + $0x24] sm:$0xf]
        %v1684 = vld [vmem:[#allocation11 + $0x28] sm:$0xf]
        %v1685 = vld [vmem:[#allocation11 + $0x2c] sm:$0xf]
        %v1686 = vld [vmem:[#allocation11 + $0x30] sm:$0xf]
        %v1687 = vld [vmem:[#allocation11 + $0x34] sm:$0xf]
        %v1688 = vld [vmem:[#allocation11 + $0x38] sm:$0xf]
        %v1689 = vld [vmem:[#allocation11 + $0x3c] sm:$0xf]
        %v1690 = vld [vmem:[#allocation11 + $0x40] sm:$0xf]
        %v1691 = vld [vmem:[#allocation11 + $0x44] sm:$0xf]
        %v1692 = vld [vmem:[#allocation11 + $0x48] sm:$0xf]
        %v1693 = vld [vmem:[#allocation11 + $0x4c] sm:$0xf]
        %v1694 = vld [vmem:[#allocation11 + $0x50] sm:$0xf]
        %v1695 = vld [vmem:[#allocation11 + $0x54] sm:$0xf]
        %v1696 = vld [vmem:[#allocation11 + $0x58] sm:$0xf]
        %v1697 = vld [vmem:[#allocation11 + $0x5c] sm:$0xf]
        %v1698 = vld [vmem:[#allocation11 + $0x60] sm:$0xf]
        %v1699 = vld [vmem:[#allocation11 + $0x64] sm:$0xf]
        %v1700 = vld [vmem:[#allocation11 + $0x68] sm:$0xf]
        %v1701 = vld [vmem:[#allocation11 + $0x6c] sm:$0xf]
        %v1702 = vld [vmem:[#allocation11 + $0x70] sm:$0xf]
        %v1703 = vld [vmem:[#allocation11 + $0x74] sm:$0xf]
        %v1704 = vld [vmem:[#allocation11 + $0x78] sm:$0xf]
        %v1705 = vld [vmem:[#allocation11 + $0x7c] sm:$0xf]
        %v1706 = vld [vmem:[#allocation11 + $0x80] sm:$0xf]
        %v1707 = vld [vmem:[#allocation11 + $0x84] sm:$0xf]
        %v1708 = vld [vmem:[#allocation11 + $0x88] sm:$0xf]
        %v1709 = vld [vmem:[#allocation11 + $0x8c] sm:$0xf]
        %v1710 = vld [vmem:[#allocation11 + $0x90] sm:$0xf]
        %v1711 = vld [vmem:[#allocation11 + $0x94] sm:$0xf]
        %v1712 = vld [vmem:[#allocation11 + $0x98] sm:$0xf]
        %v1713 = vld [vmem:[#allocation11 + $0x9c] sm:$0xf]
        %v1714 = vld [vmem:[#allocation11 + $0xa0] sm:$0xf]
        %v1715 = vld [vmem:[#allocation11 + $0xa4] sm:$0xf]
        %v1716 = vld [vmem:[#allocation11 + $0xa8] sm:$0xf]
        %v1717 = vld [vmem:[#allocation11 + $0xac] sm:$0xf]
        %v1718 = vld [vmem:[#allocation11 + $0xb0] sm:$0xf]
        %v1719 = vld [vmem:[#allocation11 + $0xb4] sm:$0xf]
        %v1720 = vld [vmem:[#allocation11 + $0xb8] sm:$0xf]
        %v1721 = vld [vmem:[#allocation11 + $0xbc] sm:$0xf]
        %v1722 = vld [vmem:[%s15] sm:$0x1]
        %v1724 = vperm.slane %v1722, 0
        %vm1732 = vcmask 1045504
        %v1733 = vrot.slane %v1668, 2
        %v1734 = vrot.slane %v1671, 2
        %v1735 = vsel %vm1732, %v1733, %v1734
        %v1736 = vrot.slane %v1669, 2
        %v1737 = vrot.slane %v1672, 2
        %v1738 = vsel %vm1732, %v1736, %v1737
        %v1739 = vrot.slane %v1670, 2
        %v1740 = vrot.slane %v1673, 2
        %v1741 = vsel %vm1732, %v1739, %v1740
        %v1793 = vunpack.c.l.b16 %v1674
        %v1794 = vunpack.c.l.b16 %v1675
        %v1795 = vunpack.c.l.b16 %v1676
        %v1796 = vunpack.c.l.b16 %v1677
        %v1797 = vunpack.c.l.b16 %v1678
        %v1798 = vunpack.c.l.b16 %v1679
        %v1799 = vunpack.c.l.b16 %v1680
        %v1800 = vunpack.c.l.b16 %v1681
        %v1801 = vunpack.c.l.b16 %v1682
        %v1802 = vunpack.c.l.b16 %v1683
        %v1803 = vunpack.c.l.b16 %v1684
        %v1804 = vunpack.c.l.b16 %v1685
        %v1805 = vunpack.c.l.b16 %v1686
        %v1806 = vunpack.c.l.b16 %v1687
        %v1807 = vunpack.c.l.b16 %v1688
        %v1808 = vunpack.c.l.b16 %v1689
        %v1809 = vunpack.c.l.b16 %v1690
        %v1810 = vunpack.c.l.b16 %v1691
        %v1811 = vunpack.c.l.b16 %v1692
        %v1812 = vunpack.c.l.b16 %v1693
        %v1813 = vunpack.c.l.b16 %v1694
        %v1814 = vunpack.c.l.b16 %v1695
        %v1815 = vunpack.c.l.b16 %v1696
        %v1816 = vunpack.c.l.b16 %v1697
        %v1817 = vunpack.c.l.b16 %v1698
        %v1818 = vunpack.c.l.b16 %v1699
        %v1819 = vunpack.c.l.b16 %v1700
        %v1820 = vunpack.c.l.b16 %v1701
        %v1821 = vunpack.c.l.b16 %v1702
        %v1822 = vunpack.c.l.b16 %v1703
        %v1823 = vunpack.c.l.b16 %v1704
        %v1824 = vunpack.c.l.b16 %v1705
        %v1825 = vunpack.c.l.b16 %v1706
        %v1826 = vunpack.c.l.b16 %v1707
        %v1827 = vunpack.c.l.b16 %v1708
        %v1828 = vunpack.c.l.b16 %v1709
        %v1829 = vunpack.c.l.b16 %v1710
        %v1830 = vunpack.c.l.b16 %v1711
        %v1831 = vunpack.c.l.b16 %v1712
        %v1832 = vunpack.c.l.b16 %v1713
        %v1833 = vunpack.c.l.b16 %v1714
        %v1834 = vunpack.c.l.b16 %v1715
        %v1835 = vunpack.c.l.b16 %v1716
        %v1836 = vunpack.c.l.b16 %v1717
        %v1837 = vunpack.c.l.b16 %v1718
        %v1838 = vunpack.c.l.b16 %v1719
        %v1839 = vunpack.c.l.b16 %v1720
        %v1840 = vunpack.c.l.b16 %v1721
        %v1841 = vpack.c.b16 %v1794, %v1793
        %v1842 = vpack.c.b16 %v1796, %v1795
        %v1843 = vpack.c.b16 %v1798, %v1797
        %v1844 = vpack.c.b16 %v1800, %v1799
        %v1845 = vpack.c.b16 %v1802, %v1801
        %v1846 = vpack.c.b16 %v1804, %v1803
        %v1847 = vpack.c.b16 %v1806, %v1805
        %v1848 = vpack.c.b16 %v1808, %v1807
        %v1849 = vpack.c.b16 %v1810, %v1809
        %v1850 = vpack.c.b16 %v1812, %v1811
        %v1851 = vpack.c.b16 %v1814, %v1813
        %v1852 = vpack.c.b16 %v1816, %v1815
        %v1853 = vpack.c.b16 %v1818, %v1817
        %v1854 = vpack.c.b16 %v1820, %v1819
        %v1855 = vpack.c.b16 %v1822, %v1821
        %v1856 = vpack.c.b16 %v1824, %v1823
        %v1857 = vpack.c.b16 %v1826, %v1825
        %v1858 = vpack.c.b16 %v1828, %v1827
        %v1859 = vpack.c.b16 %v1830, %v1829
        %v1860 = vpack.c.b16 %v1832, %v1831
        %v1861 = vpack.c.b16 %v1834, %v1833
        %v1862 = vpack.c.b16 %v1836, %v1835
        %v1863 = vpack.c.b16 %v1838, %v1837
        %v1864 = vpack.c.b16 %v1840, %v1839
        %1889 = vmatpush.bf16.msra.mxu0 %v1848
        %1890 = vmatpush.bf16.msra.mxu0 %v1847
        %1891 = vmatpush.bf16.msra.mxu0 %v1846
        %1892 = vmatpush.bf16.msra.mxu0 %v1845
        %1893 = vmatpush.bf16.msra.mxu0 %v1844
        %1894 = vmatpush.bf16.msra.mxu0 %v1843
        %1895 = vmatpush.bf16.msra.mxu0 %v1842
        %1896 = vmatpush.bf16.msra.mxu0 %v1841
        %1897 = vmatmul.bf16.gmra.mxu0 %v1735
        %v1898 = vpop.f32.mrf.mxu0
        %v1899 = vadd.f32 %v1724, %v1898
        %v1900 = vpop.f32.mrf.mxu0
        %v1901 = vadd.f32 %v1724, %v1900
        %1902 = vdwg.mxu0
        %1903 = vmatpush.bf16.msra.mxu0 %v1856
        %1904 = vmatpush.bf16.msra.mxu0 %v1855
        %1905 = vmatpush.bf16.msra.mxu0 %v1854
        %1906 = vmatpush.bf16.msra.mxu0 %v1853
        %1907 = vmatpush.bf16.msra.mxu0 %v1852
        %1908 = vmatpush.bf16.msra.mxu0 %v1851
        %1909 = vmatpush.bf16.msra.mxu0 %v1850
        %1910 = vmatpush.bf16.msra.mxu0 %v1849
        %1911 = vmatmul.bf16.gmra.mxu0 %v1738
        %v1912 = vpop.f32.mrf.mxu0
        %v1913 = vadd.f32 %v1899, %v1912
        %v1914 = vpop.f32.mrf.mxu0
        %v1915 = vadd.f32 %v1901, %v1914
        %1916 = vdwg.mxu0
        %1917 = vmatpush.bf16.msra.mxu0 %v1864
        %1918 = vmatpush.bf16.msra.mxu0 %v1863
        %1919 = vmatpush.bf16.msra.mxu0 %v1862
        %1920 = vmatpush.bf16.msra.mxu0 %v1861
        %1921 = vmatpush.bf16.msra.mxu0 %v1860
        %1922 = vmatpush.bf16.msra.mxu0 %v1859
        %1923 = vmatpush.bf16.msra.mxu0 %v1858
        %1924 = vmatpush.bf16.msra.mxu0 %v1857
        %1925 = vmatmul.bf16.gmra.mxu0 %v1741
        %v1926 = vpop.f32.mrf.mxu0
        %v1927 = vadd.f32 %v1913, %v1926
        %v1928 = vpop.f32.mrf.mxu0
        %v1929 = vadd.f32 %v1915, %v1928
        %1930 = vdwg.mxu0
        %v1931 = vmul.f32 %v1927, %v1246
        %v1932 = vmul.f32 %v1929, %v1251
        %v1933 = vld [vmem:[%s763] sm:$0x1]
        %v1935 = vperm.slane %v1933, 0
        %v1937 = vmul.f32 %v1931, %v1935
        %v1938 = vmul.f32 %v1932, %v1935
        %v1939 = vld [vmem:[%s902] sm:$0x1]
        %v1941 = vperm.slane %v1939, 0
        %v1943 = vadd.f32 %v1937, %v1941
        %v1944 = vadd.f32 %v1938, %v1941
        %vm1945 = vcmp.gt.f32.partialorder %v1943, 0.0
        %vm1946 = vcmp.gt.f32.partialorder %v1944, 0.0
        %v1947 = vmul.f32 %v1943, 0.2
        %v1948 = vmul.f32 %v1944, 0.2
        %v1949 = vsel %vm1945, %v1943, %v1947
        %v1950 = vsel %vm1946, %v1944, %v1948
        %v1951 = vpack.c.bf16 %v1949, 0.0
        %v1952 = vpack.c.bf16 %v1950, %v1949
        %v1953 = vpack.c.bf16 0.0, %v1950
        %v1954 = vld [vmem:[#allocation13] sm:$0xf]
        %v1955 = vld [vmem:[#allocation13 + $0x4] sm:$0xf]
        %v1956 = vld [vmem:[#allocation13 + $0x8] sm:$0xf]
        %v1957 = vld [vmem:[#allocation13 + $0xc] sm:$0xf]
        %v1958 = vld [vmem:[#allocation13 + $0x10] sm:$0xf]
        %v1959 = vld [vmem:[#allocation13 + $0x14] sm:$0xf]
        %v1960 = vld [vmem:[#allocation13 + $0x18] sm:$0xf]
        %v1961 = vld [vmem:[#allocation13 + $0x1c] sm:$0xf]
        %v1962 = vld [vmem:[#allocation13 + $0x20] sm:$0xf]
        %v1963 = vld [vmem:[#allocation13 + $0x24] sm:$0xf]
        %v1964 = vld [vmem:[#allocation13 + $0x28] sm:$0xf]
        %v1965 = vld [vmem:[#allocation13 + $0x2c] sm:$0xf]
        %v1966 = vld [vmem:[#allocation13 + $0x30] sm:$0xf]
        %v1967 = vld [vmem:[#allocation13 + $0x34] sm:$0xf]
        %v1968 = vld [vmem:[#allocation13 + $0x38] sm:$0xf]
        %v1969 = vld [vmem:[#allocation13 + $0x3c] sm:$0xf]
        %v1970 = vld [vmem:[#allocation13 + $0x40] sm:$0xf]
        %v1971 = vld [vmem:[#allocation13 + $0x44] sm:$0xf]
        %v1972 = vld [vmem:[#allocation13 + $0x48] sm:$0xf]
        %v1973 = vld [vmem:[#allocation13 + $0x4c] sm:$0xf]
        %v1974 = vld [vmem:[#allocation13 + $0x50] sm:$0xf]
        %v1975 = vld [vmem:[#allocation13 + $0x54] sm:$0xf]
        %v1976 = vld [vmem:[#allocation13 + $0x58] sm:$0xf]
        %v1977 = vld [vmem:[#allocation13 + $0x5c] sm:$0xf]
        %v1978 = vld [vmem:[#allocation13 + $0x60] sm:$0xf]
        %v1979 = vld [vmem:[#allocation13 + $0x64] sm:$0xf]
        %v1980 = vld [vmem:[#allocation13 + $0x68] sm:$0xf]
        %v1981 = vld [vmem:[#allocation13 + $0x6c] sm:$0xf]
        %v1982 = vld [vmem:[#allocation13 + $0x70] sm:$0xf]
        %v1983 = vld [vmem:[#allocation13 + $0x74] sm:$0xf]
        %v1984 = vld [vmem:[#allocation13 + $0x78] sm:$0xf]
        %v1985 = vld [vmem:[#allocation13 + $0x7c] sm:$0xf]
        %v1986 = vld [vmem:[#allocation13 + $0x80] sm:$0xf]
        %v1987 = vld [vmem:[#allocation13 + $0x84] sm:$0xf]
        %v1988 = vld [vmem:[#allocation13 + $0x88] sm:$0xf]
        %v1989 = vld [vmem:[#allocation13 + $0x8c] sm:$0xf]
        %v1990 = vld [vmem:[#allocation13 + $0x90] sm:$0xf]
        %v1991 = vld [vmem:[#allocation13 + $0x94] sm:$0xf]
        %v1992 = vld [vmem:[#allocation13 + $0x98] sm:$0xf]
        %v1993 = vld [vmem:[#allocation13 + $0x9c] sm:$0xf]
        %v1994 = vld [vmem:[#allocation13 + $0xa0] sm:$0xf]
        %v1995 = vld [vmem:[#allocation13 + $0xa4] sm:$0xf]
        %v1996 = vld [vmem:[#allocation13 + $0xa8] sm:$0xf]
        %v1997 = vld [vmem:[#allocation13 + $0xac] sm:$0xf]
        %v1998 = vld [vmem:[#allocation13 + $0xb0] sm:$0xf]
        %v1999 = vld [vmem:[#allocation13 + $0xb4] sm:$0xf]
        %v2000 = vld [vmem:[#allocation13 + $0xb8] sm:$0xf]
        %v2001 = vld [vmem:[#allocation13 + $0xbc] sm:$0xf]
        %v2002 = vld [vmem:[%s17] sm:$0x1]
        %v2004 = vperm.slane %v2002, 0
        %v2054 = vunpack.c.l.b16 %v1954
        %v2055 = vunpack.c.l.b16 %v1955
        %v2056 = vunpack.c.l.b16 %v1956
        %v2057 = vunpack.c.l.b16 %v1957
        %v2058 = vunpack.c.l.b16 %v1958
        %v2059 = vunpack.c.l.b16 %v1959
        %v2060 = vunpack.c.l.b16 %v1960
        %v2061 = vunpack.c.l.b16 %v1961
        %v2062 = vunpack.c.l.b16 %v1962
        %v2063 = vunpack.c.l.b16 %v1963
        %v2064 = vunpack.c.l.b16 %v1964
        %v2065 = vunpack.c.l.b16 %v1965
        %v2066 = vunpack.c.l.b16 %v1966
        %v2067 = vunpack.c.l.b16 %v1967
        %v2068 = vunpack.c.l.b16 %v1968
        %v2069 = vunpack.c.l.b16 %v1969
        %v2070 = vunpack.c.l.b16 %v1970
        %v2071 = vunpack.c.l.b16 %v1971
        %v2072 = vunpack.c.l.b16 %v1972
        %v2073 = vunpack.c.l.b16 %v1973
        %v2074 = vunpack.c.l.b16 %v1974
        %v2075 = vunpack.c.l.b16 %v1975
        %v2076 = vunpack.c.l.b16 %v1976
        %v2077 = vunpack.c.l.b16 %v1977
        %v2078 = vunpack.c.l.b16 %v1978
        %v2079 = vunpack.c.l.b16 %v1979
        %v2080 = vunpack.c.l.b16 %v1980
        %v2081 = vunpack.c.l.b16 %v1981
        %v2082 = vunpack.c.l.b16 %v1982
        %v2083 = vunpack.c.l.b16 %v1983
        %v2084 = vunpack.c.l.b16 %v1984
        %v2085 = vunpack.c.l.b16 %v1985
        %v2086 = vunpack.c.l.b16 %v1986
        %v2087 = vunpack.c.l.b16 %v1987
        %v2088 = vunpack.c.l.b16 %v1988
        %v2089 = vunpack.c.l.b16 %v1989
        %v2090 = vunpack.c.l.b16 %v1990
        %v2091 = vunpack.c.l.b16 %v1991
        %v2092 = vunpack.c.l.b16 %v1992
        %v2093 = vunpack.c.l.b16 %v1993
        %v2094 = vunpack.c.l.b16 %v1994
        %v2095 = vunpack.c.l.b16 %v1995
        %v2096 = vunpack.c.l.b16 %v1996
        %v2097 = vunpack.c.l.b16 %v1997
        %v2098 = vunpack.c.l.b16 %v1998
        %v2099 = vunpack.c.l.b16 %v1999
        %v2100 = vunpack.c.l.b16 %v2000
        %v2101 = vunpack.c.l.b16 %v2001
        %v2102 = vpack.c.b16 %v2055, %v2054
        %v2103 = vpack.c.b16 %v2057, %v2056
        %v2104 = vpack.c.b16 %v2059, %v2058
        %v2105 = vpack.c.b16 %v2061, %v2060
        %v2106 = vpack.c.b16 %v2063, %v2062
        %v2107 = vpack.c.b16 %v2065, %v2064
        %v2108 = vpack.c.b16 %v2067, %v2066
        %v2109 = vpack.c.b16 %v2069, %v2068
        %v2110 = vpack.c.b16 %v2071, %v2070
        %v2111 = vpack.c.b16 %v2073, %v2072
        %v2112 = vpack.c.b16 %v2075, %v2074
        %v2113 = vpack.c.b16 %v2077, %v2076
        %v2114 = vpack.c.b16 %v2079, %v2078
        %v2115 = vpack.c.b16 %v2081, %v2080
        %v2116 = vpack.c.b16 %v2083, %v2082
        %v2117 = vpack.c.b16 %v2085, %v2084
        %v2118 = vpack.c.b16 %v2087, %v2086
        %v2119 = vpack.c.b16 %v2089, %v2088
        %v2120 = vpack.c.b16 %v2091, %v2090
        %v2121 = vpack.c.b16 %v2093, %v2092
        %v2122 = vpack.c.b16 %v2095, %v2094
        %v2123 = vpack.c.b16 %v2097, %v2096
        %v2124 = vpack.c.b16 %v2099, %v2098
        %v2125 = vpack.c.b16 %v2101, %v2100
        %2150 = vmatpush.bf16.msra.mxu0 %v2109
        %2151 = vmatpush.bf16.msra.mxu0 %v2108
        %2152 = vmatpush.bf16.msra.mxu0 %v2107
        %2153 = vmatpush.bf16.msra.mxu0 %v2106
        %2154 = vmatpush.bf16.msra.mxu0 %v2105
        %2155 = vmatpush.bf16.msra.mxu0 %v2104
        %2156 = vmatpush.bf16.msra.mxu0 %v2103
        %2157 = vmatpush.bf16.msra.mxu0 %v2102
        %2158 = vmatmul.bf16.gmra.mxu0 %v1951
        %v2159 = vpop.f32.mrf.mxu0
        %v2160 = vadd.f32 %v2004, %v2159
        %v2161 = vpop.f32.mrf.mxu0
        %v2162 = vadd.f32 %v2004, %v2161
        %2163 = vdwg.mxu0
        %2164 = vmatpush.bf16.msra.mxu0 %v2117
        %2165 = vmatpush.bf16.msra.mxu0 %v2116
        %2166 = vmatpush.bf16.msra.mxu0 %v2115
        %2167 = vmatpush.bf16.msra.mxu0 %v2114
        %2168 = vmatpush.bf16.msra.mxu0 %v2113
        %2169 = vmatpush.bf16.msra.mxu0 %v2112
        %2170 = vmatpush.bf16.msra.mxu0 %v2111
        %2171 = vmatpush.bf16.msra.mxu0 %v2110
        %2172 = vmatmul.bf16.gmra.mxu0 %v1952
        %v2173 = vpop.f32.mrf.mxu0
        %v2174 = vadd.f32 %v2160, %v2173
        %v2175 = vpop.f32.mrf.mxu0
        %v2176 = vadd.f32 %v2162, %v2175
        %2177 = vdwg.mxu0
        %2178 = vmatpush.bf16.msra.mxu0 %v2125
        %2179 = vmatpush.bf16.msra.mxu0 %v2124
        %2180 = vmatpush.bf16.msra.mxu0 %v2123
        %2181 = vmatpush.bf16.msra.mxu0 %v2122
        %2182 = vmatpush.bf16.msra.mxu0 %v2121
        %2183 = vmatpush.bf16.msra.mxu0 %v2120
        %2184 = vmatpush.bf16.msra.mxu0 %v2119
        %2185 = vmatpush.bf16.msra.mxu0 %v2118
        %2186 = vmatmul.bf16.gmra.mxu0 %v1953
        %v2187 = vpop.f32.mrf.mxu0
        %v2188 = vadd.f32 %v2174, %v2187
        %v2189 = vpop.f32.mrf.mxu0
        %v2190 = vadd.f32 %v2176, %v2189
        %2191 = vdwg.mxu0
        %v2192 = vmul.f32 %v2188, %v1246
        %v2193 = vmul.f32 %v2190, %v1251
        %v2194 = vadd.f32 %v2192, %v1640
        %v2195 = vadd.f32 %v2193, %v1641
        %2196 = vst [vmem:[%s877] sm:$0xff] %v2194
        %2197 = vst [vmem:[%s877 + $0x8] sm:$0xff] %v2195
        %s2198 = sand.u32 %s521, 1
        %s2199 = scalar_lea.sflag [#allocation4], %s2198
        %s2200 = sand.u32 %s521, 1
        %s2201 = smul.addr %s2200, 16
        %s2202 = scalar_lea.vmem [#allocation16], %s2201
        // Predicated region
        $region133: #{tpu_custom_call.1} parent=99 // pred_check
          %p2203 = pneg %p531
        $region134: #{tpu_custom_call.1} parent=99 // pred_check_branch
          %2205 = sbr.rel (%p2203) target = $region136
        $region135: #{tpu_custom_call.1} parent=99 // pred_region
          %2207 = vsyncadd %s2199, 0
          %s2208 = smul.addr %s43, 2
          %s2209 = smul.addr %s2208, 8
          %s2210 = scalar_lea.hbm %s20, %s2209
          %s2211 = sshll.u32 %s2202, 4
          %s2212 = int_to_ptr.vmem [resolvable:$true] %s2211
          %s2213 = sshll.u32 %s2210, 4
          %s2214 = int_to_ptr.hbm [resolvable:$true] %s2213
          %2219 = dma.vmem_to_hbm [thread:$0]  %s2212, 256, %s2214, %s2199, 128, 128, 8
        $region136: #{tpu_custom_call.1} parent=99 // pred_fallthru
          _
      $region100: #{tpu_custom_call.1} parent=5 // pred_fallthru
        _
      %p2220 = scmp.le.s32.totalorder 2, %s38
      // Predicated region
      $region137: #{tpu_custom_call.1} parent=5 // pred_check
        %p2221 = pneg %p2220
      $region138: #{tpu_custom_call.1} parent=5 // pred_check_branch
        %2223 = sbr.rel (%p2221) target = $region140
      $region139: #{tpu_custom_call.1} parent=5 // pred_region
        %s2224 = ssub.s32 %s38, 2
        // Predicated region
        $region141: #{tpu_custom_call.1} parent=139 // pred_check
          %p2225 = pneg %p537
        $region142: #{tpu_custom_call.1} parent=139 // pred_check_branch
          %2227 = sbr.rel (%p2225) target = $region144
        $region143: #{tpu_custom_call.1} parent=139 // pred_region
          %s2228 = sand.u32 %s522, 1
          %s2229 = scalar_lea.sflag [#allocation4], %s2228
          %s2230 = sand.u32 %s522, 1
          %s2231 = smul.addr %s2230, 16
          %s2232 = scalar_lea.vmem [#allocation16], %s2231
          %2234 = dma.done %s2229, 256
        $region144: #{tpu_custom_call.1} parent=139 // pred_fallthru
          _
      $region140: #{tpu_custom_call.1} parent=5 // pred_fallthru
        _
    $region6: #{tpu_custom_call.1} parent=1 // loop_footer
      %s42 = sadd.s32 1, %s38
    $region7: #{tpu_custom_call.1} parent=1 // loop_footer_branch
      %37 = sbr.rel target = $region3
    $region8: #{tpu_custom_call.1} parent=1 // loop_exit
      _
    %2235 = vsyncpa [#allocation3], 1
    %s2236 = scalar_lea.sflag [#allocation3], 1
    %2237 = vsyncpa %s2236, 1
    %2238 = vsyncpa [#allocation6], 1
    %s2239 = scalar_lea.sflag [#allocation6], 1
    %2240 = vsyncpa %s2239, 1
    %2241 = vsyncpa [#allocation9], 1
    %2242 = vsyncpa [#allocation12], 1
    %2243 = vsyncpa [#allocation15], 1
    %2244 = vsyncpa [#allocation4], 1
    %s2245 = scalar_lea.sflag [#allocation4], 1
    %2246 = vsyncpa %s2245, 1

</llo_original>
